<compile_context>
chip_gen: v7x
topology: tpu7x:2x2x1
jax: 0.10.0
libtpu: 0.0.40
codegen_flags: <defaults>
</compile_context>

<pallas_src>
import functools

import jax
import jax.numpy as jnp
from jax.experimental import pallas as pl
from jax.experimental.pallas import tpu as pltpu

NUM_HIDDEN = 7          # 7 x (Linear -> ReLU -> BN -> Dropout) blocks
HIDDEN = 256
BN_EPS = 1e-5


# --------------------------------------------------------------------------- #
# Kernel
# --------------------------------------------------------------------------- #
def confidnet_kernel(x_ref, t_ref, w0_ref, ws_ref, b_ref, bout_ref,
                     out_ref, sqerr_ref):
    """One batch tile of the fused MLP.

    x_ref     : [TILE_B, D_in]   f32 input tile
    t_ref     : [TILE_B, 1]      f32 targets tile
    w0_ref    : [D_in, 256]      bf16 layer-0 weight (VMEM resident)
    ws_ref    : [6, 256, 256]    bf16 layers 1..6 weights, BN-folded (resident)
    b_ref     : [8, 256]         f32: rows 0..6 = folded biases, row 7 = folded
                                 256->1 head weight row (resident)
    bout_ref  : [1, 1]           f32 folded head bias (resident)
    out_ref   : [TILE_B, 1]      network output
    sqerr_ref : [TILE_B, 1]      per-sample squared error (mean taken outside)
    """
    b_all = b_ref[...]                                   # [8, 256] f32, one load

    h = x_ref[...].astype(jnp.float32)

    # Layer 0: Linear(D_in -> 256) + ReLU  (bf16 MXU, f32 accumulate)
    h = jnp.dot(h.astype(jnp.bfloat16), w0_ref[...],
                preferred_element_type=jnp.float32)
    h = jnp.maximum(h + b_all[0], 0.0)

    # Layers 1..6: Linear(256 -> 256) + ReLU (previous BN folded into weights).
    # Static Python loop -> fully unrolled, static ws_ref indices.
    for l in range(1, NUM_HIDDEN):
        h = jnp.dot(h.astype(jnp.bfloat16), ws_ref[l - 1],
                    preferred_element_type=jnp.float32)
        h = jnp.maximum(h + b_all[l], 0.0)

    # Final Linear(256 -> 1) as a lane reduction (XLU slot); BN_6 already folded.
    w_out = b_all[NUM_HIDDEN]                            # [256] f32
    out = jnp.sum(h * w_out, axis=-1, keepdims=True) + bout_ref[...]   # [TILE_B, 1]

    out_ref[...] = out.astype(out_ref.dtype)

    # Per-sample squared error; reduction='mean' is finished in the wrapper so
    # the batch grid axis stays "parallel" (megacore-friendly on v7x).
    diff = out - t_ref[...].astype(jnp.float32)
    sqerr_ref[...] = diff * diff


# --------------------------------------------------------------------------- #
# Parameter construction + offline BN folding
# --------------------------------------------------------------------------- #
def make_params(key, input_dims, num_classes=1):
    """Deterministic synthetic parameters (PyTorch-like uniform Linear init).

    Returns the *unfolded* f32 parameter list:
      [w0, b0, bn_scale0, bn_shift0, ..., w6, b6, bn_scale6, bn_shift6, w_out, b_out]
    with Linear weights already transposed to [in, out].
    """
    params = []
    keys = jax.random.split(key, NUM_HIDDEN * 6 + 2)
    k_i = 0
    fan_in = input_dims
    for _ in range(NUM_HIDDEN):
        bound = 1.0 / jnp.sqrt(fan_in)
        w = jax.random.uniform(keys[k_i], (fan_in, HIDDEN), jnp.float32, -bound, bound); k_i += 1
        b = jax.random.uniform(keys[k_i], (1, HIDDEN), jnp.float32, -bound, bound);       k_i += 1
        # BatchNorm1d parameters / running stats (eval mode)
        gamma = 1.0 + 0.1 * jax.random.normal(keys[k_i], (1, HIDDEN), jnp.float32); k_i += 1
        beta = 0.05 * jax.random.normal(keys[k_i], (1, HIDDEN), jnp.float32);       k_i += 1
        r_mean = 0.1 * jax.random.normal(keys[k_i], (1, HIDDEN), jnp.float32);      k_i += 1
        r_var = 1.0 + 0.1 * jax.random.uniform(keys[k_i], (1, HIDDEN), jnp.float32); k_i += 1
        bn_scale = gamma / jnp.sqrt(r_var + BN_EPS)
        bn_shift = beta - r_mean * bn_scale
        params += [w, b, bn_scale, bn_shift]
        fan_in = HIDDEN
    bound = 1.0 / jnp.sqrt(HIDDEN)
    w_out = jax.random.uniform(keys[k_i], (num_classes, HIDDEN), jnp.float32, -bound, bound); k_i += 1
    b_out = jax.random.uniform(keys[k_i], (1, num_classes), jnp.float32, -bound, bound);      k_i += 1
    params += [w_out, b_out]
    return params


def fold_params(params, weight_dtype=jnp.bfloat16):
    """Fold eval-mode BatchNorm into the following Linear layers and pack refs.

    Returns (w0, w_stack, b_stack, b_out):
      w0      : [D_in, 256]  weight_dtype
      w_stack : [6, 256, 256] weight_dtype  (layers 1..6, BN_{l-1} folded in)
      b_stack : [8, 256] f32  rows 0..6 = folded biases, row 7 = folded head row
      b_out   : [1, 1] f32    folded head bias
    """
    ws, bs = [], []
    prev_sc = None
    prev_sh = None
    for l in range(NUM_HIDDEN):
        w, b, sc, sh = params[4 * l:4 * l + 4]
        if prev_sc is None:
            w_f, b_f = w, b
        else:
            w_f = w * prev_sc.reshape(-1, 1)          # diag(scale) @ W
            b_f = b + prev_sh @ w                     # shift @ W + b
        ws.append(w_f)
        bs.append(b_f.reshape(HIDDEN))
        prev_sc = sc.reshape(-1)
        prev_sh = sh.reshape(1, -1)

    w_head, b_head = params[-2], params[-1]           # [1, 256], [1, 1]
    w_head_f = w_head.reshape(-1) * prev_sc           # [256]
    b_head_f = b_head + jnp.sum(prev_sh.reshape(-1) * w_head.reshape(-1))

    w0 = ws[0].astype(weight_dtype)
    w_stack = jnp.stack(ws[1:], axis=0).astype(weight_dtype)           # [6,256,256]
    b_stack = jnp.concatenate(
        [jnp.stack(bs, axis=0), w_head_f.reshape(1, HIDDEN)], axis=0
    ).astype(jnp.float32)                                              # [8,256]
    return w0, w_stack, b_stack, b_head_f.reshape(1, 1).astype(jnp.float32)


# --------------------------------------------------------------------------- #
# Wrapper
# --------------------------------------------------------------------------- #
@functools.partial(jax.jit, static_argnames=("tile_b",))
def confidnet8_forward(x, targets, w0, w_stack, b_stack, b_out, *, tile_b=128):
    B, d_in = x.shape
    C = targets.shape[1]
    assert C == 1, "kernel's lane-reduction head assumes num_classes == 1"

    # Pad the batch to a multiple of tile_b (padded rows sliced off below).
    n_tiles = pl.cdiv(B, tile_b)
    b_pad = n_tiles * tile_b
    if b_pad != B:
        x = jnp.pad(x, ((0, b_pad - B), (0, 0)))
        targets = jnp.pad(targets, ((0, b_pad - B), (0, 0)))

    n_rest = w_stack.shape[0]                          # NUM_HIDDEN - 1
    grid = (n_tiles,)

    out, sqerr = pl.pallas_call(
        confidnet_kernel,
        out_shape=(
            jax.ShapeDtypeStruct((b_pad, C), jnp.float32),   # network output
            jax.ShapeDtypeStruct((b_pad, C), jnp.float32),   # per-sample sq. error
        ),
        grid_spec=pltpu.PrefetchScalarGridSpec(
            num_scalar_prefetch=0,
            grid=grid,
            in_specs=[
                pl.BlockSpec((tile_b, d_in), lambda i: (i, 0)),            # x tile
                pl.BlockSpec((tile_b, C), lambda i: (i, 0)),               # targets tile
                pl.BlockSpec((d_in, HIDDEN), lambda i: (0, 0)),            # w0 (resident)
                pl.BlockSpec((n_rest, HIDDEN, HIDDEN), lambda i: (0, 0, 0)),  # w_stack
                pl.BlockSpec((NUM_HIDDEN + 1, HIDDEN), lambda i: (0, 0)),  # b_stack
                pl.BlockSpec((1, 1), lambda i: (0, 0)),                    # b_out
            ],
            out_specs=(
                pl.BlockSpec((tile_b, C), lambda i: (i, 0)),
                pl.BlockSpec((tile_b, C), lambda i: (i, 0)),
            ),
        ),
        compiler_params=pltpu.CompilerParams(
            dimension_semantics=("parallel",),    # megacore sharding on v7x
        ),
    )(x, targets, w0, w_stack, b_stack, b_out)

    out = out[:B]
    loss = jnp.sum(sqerr[:B]) / (B * C)           # MSELoss(reduction='mean')
    return loss, out


# --------------------------------------------------------------------------- #
# Plain-JAX references
# --------------------------------------------------------------------------- #
def reference_forward(x, targets, params):
    """Original (unfolded, f32) semantics: Linear->ReLU->BN(eval)->Dropout(id)."""
    h = x.astype(jnp.float32)
    for l in range(NUM_HIDDEN):
        w, b, sc, sh = params[4 * l:4 * l + 4]
        h = jnp.maximum(h @ w + b, 0.0) * sc + sh
    w_out, b_out = params[-2], params[-1]
    out = h @ w_out.T + b_out
    loss = jnp.mean((out - targets) ** 2)
    return loss, out


def reference_forward_folded(x, targets, w0, w_stack, b_stack, b_out):
    """Folded-parameter reference (used to validate the BN folding math)."""
    h = x.astype(jnp.float32)
    h = jnp.maximum(h @ w0.astype(jnp.float32) + b_stack[0], 0.0)
    for l in range(1, NUM_HIDDEN):
        h = jnp.maximum(h @ w_stack[l - 1].astype(jnp.float32) + b_stack[l], 0.0)
    out = jnp.sum(h * b_stack[NUM_HIDDEN], axis=-1, keepdims=True) + b_out[0, 0]
    loss = jnp.mean((out - targets) ** 2)
    return loss, out


# --------------------------------------------------------------------------- #
if __name__ == "__main__":
    key = jax.random.PRNGKey(0)
    k_x, k_t, k_p, k_x2, k_t2 = jax.random.split(key, 5)

    B, input_dims, num_classes = 16, 32, 1
    TILE_B = 8                                   # grid of 2 batch tiles

    x = jax.random.normal(k_x, (B, input_dims), jnp.float32)
    targets = jax.random.uniform(k_t, (B, num_classes), jnp.float32)  # TCP targets in [0,1]
    params = make_params(k_p, input_dims, num_classes)

    # Folding correctness check in pure f32 (tight tolerance).
    w0_f32, ws_f32, bst_f32, bout_f32 = fold_params(params, weight_dtype=jnp.float32)
    ref_loss, ref_out = reference_forward(x, targets, params)
    fold_loss, fold_out = reference_forward_folded(x, targets, w0_f32, ws_f32, bst_f32, bout_f32)
    assert jnp.allclose(fold_out, ref_out, atol=1e-4, rtol=1e-4), "BN folding mismatch (out)"
    assert jnp.allclose(fold_loss, ref_loss, atol=1e-5, rtol=1e-4), "BN folding mismatch (loss)"

    # Kernel uses bf16 MXU weights (f32 accumulate) -> loose tolerance vs f32 reference.
    w0, w_stack, b_stack, b_out = fold_params(params, weight_dtype=jnp.bfloat16)
    loss, out = confidnet8_forward(x, targets, w0, w_stack, b_stack, b_out, tile_b=TILE_B)
    loss = jax.block_until_ready(loss)
    out = jax.block_until_ready(out)
    assert jnp.allclose(out, ref_out, atol=5e-2, rtol=5e-2), "output mismatch"
    assert jnp.allclose(loss, ref_loss, atol=2e-2, rtol=5e-2), "loss mismatch"

    # Ragged-batch path (B not a multiple of tile_b -> zero-padded in wrapper).
    B2 = 13
    x2 = jax.random.normal(k_x2, (B2, input_dims), jnp.float32)
    t2 = jax.random.uniform(k_t2, (B2, num_classes), jnp.float32)
    ref_loss2, ref_out2 = reference_forward(x2, t2, params)
    loss2, out2 = confidnet8_forward(x2, t2, w0, w_stack, b_stack, b_out, tile_b=TILE_B)
    loss2 = jax.block_until_ready(loss2)
    out2 = jax.block_until_ready(out2)
    assert out2.shape == (B2, num_classes), "padded-batch output shape mismatch"
    assert jnp.allclose(out2, ref_out2, atol=5e-2, rtol=5e-2), "output mismatch (padded batch)"
    assert jnp.allclose(loss2, ref_loss2, atol=2e-2, rtol=5e-2), "loss mismatch (padded batch)"

    print("KERNEL_OK")
</pallas_src>

<mosaic_0001>
module attributes {stable_mosaic.version = 11 : i64} {
  func.func @confidnet_kernel(%arg0: i32, %arg1: memref<8x32xf32, #tpu.memory_space<vmem>>, %arg2: memref<8x1xf32, #tpu.memory_space<vmem>>, %arg3: memref<32x256xbf16, #tpu.memory_space<vmem>>, %arg4: memref<6x256x256xbf16, #tpu.memory_space<vmem>>, %arg5: memref<8x256xf32, #tpu.memory_space<vmem>>, %arg6: memref<1x1xf32, #tpu.memory_space<vmem>>, %arg7: memref<8x1xf32, #tpu.memory_space<vmem>>, %arg8: memref<8x1xf32, #tpu.memory_space<vmem>>) attributes {dimension_semantics = [#tpu.dimension_semantics<parallel>], iteration_bounds = array<i64: 2>, scalar_prefetch = 0 : i64, scratch_operands = 0 : i64, tpu.core_type = #tpu.core_type<tc>, window_params = [{transform_indices = @transform_0, window_bounds = array<i64: 8, 32>}, {transform_indices = @transform_1, window_bounds = array<i64: 8, 1>}, {pipeline_mode = #tpu.pipeline_mode<synchronous>, transform_indices = @transform_2, window_bounds = array<i64: 32, 256>}, {pipeline_mode = #tpu.pipeline_mode<synchronous>, transform_indices = @transform_3, window_bounds = array<i64: 6, 256, 256>}, {pipeline_mode = #tpu.pipeline_mode<synchronous>, transform_indices = @transform_4, window_bounds = array<i64: 8, 256>}, {pipeline_mode = #tpu.pipeline_mode<synchronous>, transform_indices = @transform_5, window_bounds = array<i64: 1, 1>}, {transform_indices = @transform_6, window_bounds = array<i64: 8, 1>}, {transform_indices = @transform_7, window_bounds = array<i64: 8, 1>}]} {
    %c0 = arith.constant 0 : index
    %c0_0 = arith.constant 0 : index
    %0 = vector.load %arg5[%c0, %c0_0] : memref<8x256xf32, #tpu.memory_space<vmem>>, vector<8x256xf32>
    %c0_1 = arith.constant 0 : index
    %c0_2 = arith.constant 0 : index
    %1 = vector.load %arg1[%c0_1, %c0_2] : memref<8x32xf32, #tpu.memory_space<vmem>>, vector<8x32xf32>
    %2 = arith.truncf %1 : vector<8x32xf32> to vector<8x32xbf16>
    %c0_3 = arith.constant 0 : index
    %c0_4 = arith.constant 0 : index
    %3 = vector.load %arg3[%c0_3, %c0_4] : memref<32x256xbf16, #tpu.memory_space<vmem>>, vector<32x256xbf16>
    %cst = arith.constant dense<0.000000e+00> : vector<8x256xf32>
    %4 = tpu.matmul %2, %3, %cst {dimension_numbers = #tpu.dot_dimension_numbers<[1], [0], [0], [1], [0, 0, 1, 1], [], []>} : vector<8x32xbf16>, vector<32x256xbf16>, vector<8x256xf32> -> vector<8x256xf32>
    %5 = vector.extract_strided_slice %0 {offsets = [0, 0], sizes = [1, 256], strides = [1, 1]} : vector<8x256xf32> to vector<1x256xf32>
    %6 = vector.shape_cast %5 : vector<1x256xf32> to vector<256xf32>
    %7 = vector.shape_cast %6 : vector<256xf32> to vector<1x256xf32>
    %8 = vector.broadcast %7 : vector<1x256xf32> to vector<8x256xf32>
    %9 = arith.addf %4, %8 : vector<8x256xf32>
    %cst_5 = arith.constant 0.000000e+00 : f32
    %10 = vector.broadcast %cst_5 : f32 to vector<8x256xf32>
    %11 = arith.maximumf %9, %10 : vector<8x256xf32>
    %12 = arith.truncf %11 : vector<8x256xf32> to vector<8x256xbf16>
    %c0_6 = arith.constant 0 : index
    %c0_7 = arith.constant 0 : index
    %c0_8 = arith.constant 0 : index
    %13 = vector.load %arg4[%c0_6, %c0_7, %c0_8] : memref<6x256x256xbf16, #tpu.memory_space<vmem>>, vector<1x256x256xbf16>
    %14 = vector.shape_cast %13 : vector<1x256x256xbf16> to vector<256x256xbf16>
    %cst_9 = arith.constant dense<0.000000e+00> : vector<8x256xf32>
    %15 = tpu.matmul %12, %14, %cst_9 {dimension_numbers = #tpu.dot_dimension_numbers<[1], [0], [0], [1], [0, 0, 1, 1], [], []>} : vector<8x256xbf16>, vector<256x256xbf16>, vector<8x256xf32> -> vector<8x256xf32>
    %16 = vector.extract_strided_slice %0 {offsets = [1, 0], sizes = [1, 256], strides = [1, 1]} : vector<8x256xf32> to vector<1x256xf32>
    %17 = vector.shape_cast %16 : vector<1x256xf32> to vector<256xf32>
    %18 = vector.shape_cast %17 : vector<256xf32> to vector<1x256xf32>
    %19 = vector.broadcast %18 : vector<1x256xf32> to vector<8x256xf32>
    %20 = arith.addf %15, %19 : vector<8x256xf32>
    %cst_10 = arith.constant 0.000000e+00 : f32
    %21 = vector.broadcast %cst_10 : f32 to vector<8x256xf32>
    %22 = arith.maximumf %20, %21 : vector<8x256xf32>
    %23 = arith.truncf %22 : vector<8x256xf32> to vector<8x256xbf16>
    %c1 = arith.constant 1 : index
    %c0_11 = arith.constant 0 : index
    %c0_12 = arith.constant 0 : index
    %24 = vector.load %arg4[%c1, %c0_11, %c0_12] : memref<6x256x256xbf16, #tpu.memory_space<vmem>>, vector<1x256x256xbf16>
    %25 = vector.shape_cast %24 : vector<1x256x256xbf16> to vector<256x256xbf16>
    %cst_13 = arith.constant dense<0.000000e+00> : vector<8x256xf32>
    %26 = tpu.matmul %23, %25, %cst_13 {dimension_numbers = #tpu.dot_dimension_numbers<[1], [0], [0], [1], [0, 0, 1, 1], [], []>} : vector<8x256xbf16>, vector<256x256xbf16>, vector<8x256xf32> -> vector<8x256xf32>
    %27 = vector.extract_strided_slice %0 {offsets = [2, 0], sizes = [1, 256], strides = [1, 1]} : vector<8x256xf32> to vector<1x256xf32>
    %28 = vector.shape_cast %27 : vector<1x256xf32> to vector<256xf32>
    %29 = vector.shape_cast %28 : vector<256xf32> to vector<1x256xf32>
    %30 = vector.broadcast %29 : vector<1x256xf32> to vector<8x256xf32>
    %31 = arith.addf %26, %30 : vector<8x256xf32>
    %cst_14 = arith.constant 0.000000e+00 : f32
    %32 = vector.broadcast %cst_14 : f32 to vector<8x256xf32>
    %33 = arith.maximumf %31, %32 : vector<8x256xf32>
    %34 = arith.truncf %33 : vector<8x256xf32> to vector<8x256xbf16>
    %c2 = arith.constant 2 : index
    %c0_15 = arith.constant 0 : index
    %c0_16 = arith.constant 0 : index
    %35 = vector.load %arg4[%c2, %c0_15, %c0_16] : memref<6x256x256xbf16, #tpu.memory_space<vmem>>, vector<1x256x256xbf16>
    %36 = vector.shape_cast %35 : vector<1x256x256xbf16> to vector<256x256xbf16>
    %cst_17 = arith.constant dense<0.000000e+00> : vector<8x256xf32>
    %37 = tpu.matmul %34, %36, %cst_17 {dimension_numbers = #tpu.dot_dimension_numbers<[1], [0], [0], [1], [0, 0, 1, 1], [], []>} : vector<8x256xbf16>, vector<256x256xbf16>, vector<8x256xf32> -> vector<8x256xf32>
    %38 = vector.extract_strided_slice %0 {offsets = [3, 0], sizes = [1, 256], strides = [1, 1]} : vector<8x256xf32> to vector<1x256xf32>
    %39 = vector.shape_cast %38 : vector<1x256xf32> to vector<256xf32>
    %40 = vector.shape_cast %39 : vector<256xf32> to vector<1x256xf32>
    %41 = vector.broadcast %40 : vector<1x256xf32> to vector<8x256xf32>
    %42 = arith.addf %37, %41 : vector<8x256xf32>
    %cst_18 = arith.constant 0.000000e+00 : f32
    %43 = vector.broadcast %cst_18 : f32 to vector<8x256xf32>
    %44 = arith.maximumf %42, %43 : vector<8x256xf32>
    %45 = arith.truncf %44 : vector<8x256xf32> to vector<8x256xbf16>
    %c3 = arith.constant 3 : index
    %c0_19 = arith.constant 0 : index
    %c0_20 = arith.constant 0 : index
    %46 = vector.load %arg4[%c3, %c0_19, %c0_20] : memref<6x256x256xbf16, #tpu.memory_space<vmem>>, vector<1x256x256xbf16>
    %47 = vector.shape_cast %46 : vector<1x256x256xbf16> to vector<256x256xbf16>
    %cst_21 = arith.constant dense<0.000000e+00> : vector<8x256xf32>
    %48 = tpu.matmul %45, %47, %cst_21 {dimension_numbers = #tpu.dot_dimension_numbers<[1], [0], [0], [1], [0, 0, 1, 1], [], []>} : vector<8x256xbf16>, vector<256x256xbf16>, vector<8x256xf32> -> vector<8x256xf32>
    %49 = vector.extract_strided_slice %0 {offsets = [4, 0], sizes = [1, 256], strides = [1, 1]} : vector<8x256xf32> to vector<1x256xf32>
    %50 = vector.shape_cast %49 : vector<1x256xf32> to vector<256xf32>
    %51 = vector.shape_cast %50 : vector<256xf32> to vector<1x256xf32>
    %52 = vector.broadcast %51 : vector<1x256xf32> to vector<8x256xf32>
    %53 = arith.addf %48, %52 : vector<8x256xf32>
    %cst_22 = arith.constant 0.000000e+00 : f32
    %54 = vector.broadcast %cst_22 : f32 to vector<8x256xf32>
    %55 = arith.maximumf %53, %54 : vector<8x256xf32>
    %56 = arith.truncf %55 : vector<8x256xf32> to vector<8x256xbf16>
    %c4 = arith.constant 4 : index
    %c0_23 = arith.constant 0 : index
    %c0_24 = arith.constant 0 : index
    %57 = vector.load %arg4[%c4, %c0_23, %c0_24] : memref<6x256x256xbf16, #tpu.memory_space<vmem>>, vector<1x256x256xbf16>
    %58 = vector.shape_cast %57 : vector<1x256x256xbf16> to vector<256x256xbf16>
    %cst_25 = arith.constant dense<0.000000e+00> : vector<8x256xf32>
    %59 = tpu.matmul %56, %58, %cst_25 {dimension_numbers = #tpu.dot_dimension_numbers<[1], [0], [0], [1], [0, 0, 1, 1], [], []>} : vector<8x256xbf16>, vector<256x256xbf16>, vector<8x256xf32> -> vector<8x256xf32>
    %60 = vector.extract_strided_slice %0 {offsets = [5, 0], sizes = [1, 256], strides = [1, 1]} : vector<8x256xf32> to vector<1x256xf32>
    %61 = vector.shape_cast %60 : vector<1x256xf32> to vector<256xf32>
    %62 = vector.shape_cast %61 : vector<256xf32> to vector<1x256xf32>
    %63 = vector.broadcast %62 : vector<1x256xf32> to vector<8x256xf32>
    %64 = arith.addf %59, %63 : vector<8x256xf32>
    %cst_26 = arith.constant 0.000000e+00 : f32
    %65 = vector.broadcast %cst_26 : f32 to vector<8x256xf32>
    %66 = arith.maximumf %64, %65 : vector<8x256xf32>
    %67 = arith.truncf %66 : vector<8x256xf32> to vector<8x256xbf16>
    %c5 = arith.constant 5 : index
    %c0_27 = arith.constant 0 : index
    %c0_28 = arith.constant 0 : index
    %68 = vector.load %arg4[%c5, %c0_27, %c0_28] : memref<6x256x256xbf16, #tpu.memory_space<vmem>>, vector<1x256x256xbf16>
    %69 = vector.shape_cast %68 : vector<1x256x256xbf16> to vector<256x256xbf16>
    %cst_29 = arith.constant dense<0.000000e+00> : vector<8x256xf32>
    %70 = tpu.matmul %67, %69, %cst_29 {dimension_numbers = #tpu.dot_dimension_numbers<[1], [0], [0], [1], [0, 0, 1, 1], [], []>} : vector<8x256xbf16>, vector<256x256xbf16>, vector<8x256xf32> -> vector<8x256xf32>
    %71 = vector.extract_strided_slice %0 {offsets = [6, 0], sizes = [1, 256], strides = [1, 1]} : vector<8x256xf32> to vector<1x256xf32>
    %72 = vector.shape_cast %71 : vector<1x256xf32> to vector<256xf32>
    %73 = vector.shape_cast %72 : vector<256xf32> to vector<1x256xf32>
    %74 = vector.broadcast %73 : vector<1x256xf32> to vector<8x256xf32>
    %75 = arith.addf %70, %74 : vector<8x256xf32>
    %cst_30 = arith.constant 0.000000e+00 : f32
    %76 = vector.broadcast %cst_30 : f32 to vector<8x256xf32>
    %77 = arith.maximumf %75, %76 : vector<8x256xf32>
    %78 = vector.extract_strided_slice %0 {offsets = [7, 0], sizes = [1, 256], strides = [1, 1]} : vector<8x256xf32> to vector<1x256xf32>
    %79 = vector.shape_cast %78 : vector<1x256xf32> to vector<256xf32>
    %80 = vector.shape_cast %79 : vector<256xf32> to vector<1x256xf32>
    %81 = vector.broadcast %80 : vector<1x256xf32> to vector<8x256xf32>
    %82 = arith.mulf %77, %81 : vector<8x256xf32>
    %cst_31 = arith.constant dense<0.000000e+00> : vector<8xf32>
    %83 = vector.multi_reduction <add>, %82, %cst_31 [1] : vector<8x256xf32> to vector<8xf32>
    %84 = vector.shape_cast %83 : vector<8xf32> to vector<8x1xf32>
    %c0_32 = arith.constant 0 : index
    %c0_33 = arith.constant 0 : index
    %85 = vector.load %arg6[%c0_32, %c0_33] : memref<1x1xf32, #tpu.memory_space<vmem>>, vector<1x1xf32>
    %86 = vector.broadcast %85 : vector<1x1xf32> to vector<8x1xf32>
    %87 = arith.addf %84, %86 : vector<8x1xf32>
    %c0_34 = arith.constant 0 : index
    %c0_35 = arith.constant 0 : index
    %88 = vector.load %arg7[%c0_34, %c0_35] : memref<8x1xf32, #tpu.memory_space<vmem>>, vector<8x1xf32>
    tpu.vector_store %arg7[%c0_34, %c0_35], %87 {strides = array<i32>} : memref<8x1xf32, #tpu.memory_space<vmem>>, vector<8x1xf32>,
    %c0_36 = arith.constant 0 : index
    %c0_37 = arith.constant 0 : index
    %89 = vector.load %arg2[%c0_36, %c0_37] : memref<8x1xf32, #tpu.memory_space<vmem>>, vector<8x1xf32>
    %90 = arith.subf %87, %89 : vector<8x1xf32>
    %91 = arith.mulf %90, %90 : vector<8x1xf32>
    %c0_38 = arith.constant 0 : index
    %c0_39 = arith.constant 0 : index
    %92 = vector.load %arg8[%c0_38, %c0_39] : memref<8x1xf32, #tpu.memory_space<vmem>>, vector<8x1xf32>
    tpu.vector_store %arg8[%c0_38, %c0_39], %91 {strides = array<i32>} : memref<8x1xf32, #tpu.memory_space<vmem>>, vector<8x1xf32>,
    return
  }
  func.func @transform_0(%arg0: i32) -> (i32, i32) {
    %c0_i32 = arith.constant 0 : i32
    %c0_i32_0 = arith.constant 0 : i32
    return %arg0, %c0_i32 : i32, i32
  }
  func.func @transform_1(%arg0: i32) -> (i32, i32) {
    %c0_i32 = arith.constant 0 : i32
    %c0_i32_0 = arith.constant 0 : i32
    return %arg0, %c0_i32 : i32, i32
  }
  func.func @transform_2(%arg0: i32) -> (i32, i32) {
    %c0_i32 = arith.constant 0 : i32
    %c0_i32_0 = arith.constant 0 : i32
    %c0_i32_1 = arith.constant 0 : i32
    return %c0_i32, %c0_i32_0 : i32, i32
  }
  func.func @transform_3(%arg0: i32) -> (i32, i32, i32) {
    %c0_i32 = arith.constant 0 : i32
    %c0_i32_0 = arith.constant 0 : i32
    %c0_i32_1 = arith.constant 0 : i32
    %c0_i32_2 = arith.constant 0 : i32
    return %c0_i32, %c0_i32_0, %c0_i32_1 : i32, i32, i32
  }
  func.func @transform_4(%arg0: i32) -> (i32, i32) {
    %c0_i32 = arith.constant 0 : i32
    %c0_i32_0 = arith.constant 0 : i32
    %c0_i32_1 = arith.constant 0 : i32
    return %c0_i32, %c0_i32_0 : i32, i32
  }
  func.func @transform_5(%arg0: i32) -> (i32, i32) {
    %c0_i32 = arith.constant 0 : i32
    %c0_i32_0 = arith.constant 0 : i32
    %c0_i32_1 = arith.constant 0 : i32
    return %c0_i32, %c0_i32_0 : i32, i32
  }
  func.func @transform_6(%arg0: i32) -> (i32, i32) {
    %c0_i32 = arith.constant 0 : i32
    %c0_i32_0 = arith.constant 0 : i32
    return %arg0, %c0_i32 : i32, i32
  }
  func.func @transform_7(%arg0: i32) -> (i32, i32) {
    %c0_i32 = arith.constant 0 : i32
    %c0_i32_0 = arith.constant 0 : i32
    return %arg0, %c0_i32 : i32, i32
  }
}

</mosaic_0001>

<llo_original>
// kernel: confidnet8_forward.1
$region0: #{confidnet8_forward.1}
  #allocation0 [shape = 'u32[]', space=smem, size = 0x4, offset = 0x4, fixed_abs, tag = 'smem constant byte address 0x4 - core index']
  #allocation1 [shape = 'u32[144,128]{1,0:T(1,128)}', space=vmem, size = 0x12000, scoped, tag = 'internal scratch']
  #allocation2 [shape = 'f32[1,1]{1,0:T(1,128)S(1)}', space=vmem, size = 0x200, scoped, tag = 'scoped memory for confidnet8_forward.1']
  %s0 = inlined_call_operand.vmem [shape: f32[16,32], index: 0, kind: input, shape index: {}]
  %s1 = inlined_call_operand.vmem [shape: f32[16,1], index: 1, kind: input, shape index: {}]
  %s2 = inlined_call_operand.hbm [shape: bf16[32,256], index: 2, kind: input, shape index: {}]
  %s3 = inlined_call_operand.hbm [shape: bf16[6,256,256], index: 3, kind: input, shape index: {}]
  %s4 = inlined_call_operand.vmem [shape: f32[8,256], index: 4, kind: input, shape index: {}]
  %s5 = inlined_call_operand.<no memory space> [shape: f32[1,1], index: 5, kind: input, shape index: {}]
  %s6 = inlined_call_operand.vmem [shape: f32[16,1], index: 6, kind: output, shape index: {0}]
  %s7 = inlined_call_operand.vmem [shape: f32[16,1], index: 7, kind: output, shape index: {1}]
  %8 = xla_tuple %s6, %s7
  %s9 = sld [smem:[#allocation0]]
  $region73: #{confidnet8_forward.1} parent=0
    _
  %s11 = ssub.s32 1, %s9
  %s12 = scalar_select 0, %s11, %s9
  %v13 = vstv %s5
  %14 = vst [vmem:[#allocation2] sm:$0x1] %v13
  $region1: #{confidnet8_forward.1} parent=0
    #allocation3 [shape = 'u8[16384]{0}', space=vmem, size = 0x4000, scoped, tag = 'input window, operand 2, single buffered']
    #allocation4 [shape = 's32[2]{0}', space=sflag, size = 0x8, scoped, tag = 'scoped memory for confidnet8_forward.1']
    #allocation5 [shape = 'u8[786432]{0}', space=vmem, size = 0xc0000, scoped, tag = 'input window, operand 3, single buffered']
    #allocation6 [shape = 's32[1]{0}', space=sflag, size = 0x4, scoped, tag = 'scoped memory for confidnet8_forward.1']
    %15 = vsyncpa [#allocation4], 0
    %16 = vsyncpa [#allocation6], 0
    loop: start=0, step=1, limit=4
    $region2: #{confidnet8_forward.1} parent=1 // loop_pre_header
      _
    $region3: #{confidnet8_forward.1} parent=1 // loop_header
      %s18 = sphi 0, %s22
      %p19 = scmp.ge.s32.totalorder %s18, 4
      %s28 = sphi 0, %s30
      %s31 = sphi 0, %s28
      %s32 = sphi 0, %s31
      %s48 = sphi 0, %s32
      %s54 = sphi 0, %s56
      %s57 = sphi 0, %s54
      %s58 = sphi 0, %s57
      %s74 = sphi 0, %s58
      %s78 = sphi 0, %s78
      %s80 = sphi 0, %s78
      %s81 = sphi 0, %s80
      %s95 = sphi 0, %s81
      %s99 = sphi 0, %s99
      %s101 = sphi 0, %s99
      %s102 = sphi 0, %s101
      %s116 = sphi 0, %s102
      %s120 = sphi 0, %s120
      %s122 = sphi 0, %s120
      %s123 = sphi 0, %s122
      %s137 = sphi 0, %s123
      %s141 = sphi 0, %s141
      %s143 = sphi 0, %s141
      %s144 = sphi 0, %s143
      %s158 = sphi 0, %s144
      %s164 = sphi 0, %s166
      %s167 = sphi 0, %s164
      %s168 = sphi 0, %s167
      %s184 = sphi 0, %s168
      %s190 = sphi 0, %s192
      %s193 = sphi 0, %s190
      %s194 = sphi 0, %s193
      %s210 = sphi 0, %s194
    $region4: #{confidnet8_forward.1} parent=1 // loop_header_branch
      %21 = sbr.rel (%p19) target = $region8
    $region5: #{confidnet8_forward.1} parent=1 // loop_body
      %s23 = ssub.s32 %s18, 1
      %s24 = ssub.s32 %s18, 2
      %s25 = sadd.s32 %s18, 1
      %s26 = ssub.s32 %s18, %s25
      %p27 = scmp.eq.s32.totalorder %s26, 0
      %s29 = sadd.s32 %s28, 1
      %s30 = scalar_select %p27, %s28, %s29
      %p33 = pneg %p27
      %p34 = scmp.eq.s32.totalorder %s18, 1
      %p35 = por %p33, %p34
      %p36 = scmp.ne.s32.totalorder %s28, %s31
      %p37 = scmp.eq.s32.totalorder %s18, 0
      %p38 = por %p36, %p37
      %p39 = scmp.ne.s32.totalorder %s28, %s31
      %p40 = scmp.eq.s32.totalorder %s23, 1
      %p41 = por %p39, %p40
      %p42 = scmp.ne.s32.totalorder %s31, %s32
      %p43 = scmp.eq.s32.totalorder %s23, 0
      %p44 = por %p42, %p43
      %p45 = scmp.ne.s32.totalorder %s31, %s32
      %p46 = scmp.eq.s32.totalorder %s24, 1
      %p47 = por %p45, %p46
      %p49 = scmp.ne.s32.totalorder %s32, %s48
      %p50 = scmp.eq.s32.totalorder %s24, 0
      %p51 = por %p49, %p50
      %s52 = ssub.s32 %s18, %s25
      %p53 = scmp.eq.s32.totalorder %s52, 0
      %s55 = sadd.s32 %s54, 1
      %s56 = scalar_select %p53, %s54, %s55
      %p59 = pneg %p53
      %p60 = scmp.eq.s32.totalorder %s18, 1
      %p61 = por %p59, %p60
      %p62 = scmp.ne.s32.totalorder %s54, %s57
      %p63 = scmp.eq.s32.totalorder %s18, 0
      %p64 = por %p62, %p63
      %p65 = scmp.ne.s32.totalorder %s54, %s57
      %p66 = scmp.eq.s32.totalorder %s23, 1
      %p67 = por %p65, %p66
      %p68 = scmp.ne.s32.totalorder %s57, %s58
      %p69 = scmp.eq.s32.totalorder %s23, 0
      %p70 = por %p68, %p69
      %p71 = scmp.ne.s32.totalorder %s57, %s58
      %p72 = scmp.eq.s32.totalorder %s24, 1
      %p73 = por %p71, %p72
      %p75 = scmp.ne.s32.totalorder %s58, %s74
      %p76 = scmp.eq.s32.totalorder %s24, 0
      %p77 = por %p75, %p76
      %s79 = sadd.s32 %s78, 1
      %p82 = scmp.eq.s32.totalorder %s18, 1
      %p83 = scmp.ne.s32.totalorder %s78, %s80
      %p84 = scmp.eq.s32.totalorder %s18, 0
      %p85 = por %p83, %p84
      %p86 = scmp.ne.s32.totalorder %s78, %s80
      %p87 = scmp.eq.s32.totalorder %s23, 1
      %p88 = por %p86, %p87
      %p89 = scmp.ne.s32.totalorder %s80, %s81
      %p90 = scmp.eq.s32.totalorder %s23, 0
      %p91 = por %p89, %p90
      %p92 = scmp.ne.s32.totalorder %s80, %s81
      %p93 = scmp.eq.s32.totalorder %s24, 1
      %p94 = por %p92, %p93
      %p96 = scmp.ne.s32.totalorder %s81, %s95
      %p97 = scmp.eq.s32.totalorder %s24, 0
      %p98 = por %p96, %p97
      %s100 = sadd.s32 %s99, 1
      %p103 = scmp.eq.s32.totalorder %s18, 1
      %p104 = scmp.ne.s32.totalorder %s99, %s101
      %p105 = scmp.eq.s32.totalorder %s18, 0
      %p106 = por %p104, %p105
      %p107 = scmp.ne.s32.totalorder %s99, %s101
      %p108 = scmp.eq.s32.totalorder %s23, 1
      %p109 = por %p107, %p108
      %p110 = scmp.ne.s32.totalorder %s101, %s102
      %p111 = scmp.eq.s32.totalorder %s23, 0
      %p112 = por %p110, %p111
      %p113 = scmp.ne.s32.totalorder %s101, %s102
      %p114 = scmp.eq.s32.totalorder %s24, 1
      %p115 = por %p113, %p114
      %p117 = scmp.ne.s32.totalorder %s102, %s116
      %p118 = scmp.eq.s32.totalorder %s24, 0
      %p119 = por %p117, %p118
      %s121 = sadd.s32 %s120, 1
      %p124 = scmp.eq.s32.totalorder %s18, 1
      %p125 = scmp.ne.s32.totalorder %s120, %s122
      %p126 = scmp.eq.s32.totalorder %s18, 0
      %p127 = por %p125, %p126
      %p128 = scmp.ne.s32.totalorder %s120, %s122
      %p129 = scmp.eq.s32.totalorder %s23, 1
      %p130 = por %p128, %p129
      %p131 = scmp.ne.s32.totalorder %s122, %s123
      %p132 = scmp.eq.s32.totalorder %s23, 0
      %p133 = por %p131, %p132
      %p134 = scmp.ne.s32.totalorder %s122, %s123
      %p135 = scmp.eq.s32.totalorder %s24, 1
      %p136 = por %p134, %p135
      %p138 = scmp.ne.s32.totalorder %s123, %s137
      %p139 = scmp.eq.s32.totalorder %s24, 0
      %p140 = por %p138, %p139
      %s142 = sadd.s32 %s141, 1
      %p145 = scmp.eq.s32.totalorder %s18, 1
      %p146 = scmp.ne.s32.totalorder %s141, %s143
      %p147 = scmp.eq.s32.totalorder %s18, 0
      %p148 = por %p146, %p147
      %p149 = scmp.ne.s32.totalorder %s141, %s143
      %p150 = scmp.eq.s32.totalorder %s23, 1
      %p151 = por %p149, %p150
      %p152 = scmp.ne.s32.totalorder %s143, %s144
      %p153 = scmp.eq.s32.totalorder %s23, 0
      %p154 = por %p152, %p153
      %p155 = scmp.ne.s32.totalorder %s143, %s144
      %p156 = scmp.eq.s32.totalorder %s24, 1
      %p157 = por %p155, %p156
      %p159 = scmp.ne.s32.totalorder %s144, %s158
      %p160 = scmp.eq.s32.totalorder %s24, 0
      %p161 = por %p159, %p160
      %s162 = ssub.s32 %s18, %s25
      %p163 = scmp.eq.s32.totalorder %s162, 0
      %s165 = sadd.s32 %s164, 1
      %s166 = scalar_select %p163, %s164, %s165
      %p169 = pneg %p163
      %p170 = scmp.eq.s32.totalorder %s18, 1
      %p171 = por %p169, %p170
      %p172 = scmp.ne.s32.totalorder %s164, %s167
      %p173 = scmp.eq.s32.totalorder %s18, 0
      %p174 = por %p172, %p173
      %p175 = scmp.ne.s32.totalorder %s164, %s167
      %p176 = scmp.eq.s32.totalorder %s23, 1
      %p177 = por %p175, %p176
      %p178 = scmp.ne.s32.totalorder %s167, %s168
      %p179 = scmp.eq.s32.totalorder %s23, 0
      %p180 = por %p178, %p179
      %p181 = scmp.ne.s32.totalorder %s167, %s168
      %p182 = scmp.eq.s32.totalorder %s24, 1
      %p183 = por %p181, %p182
      %p185 = scmp.ne.s32.totalorder %s168, %s184
      %p186 = scmp.eq.s32.totalorder %s24, 0
      %p187 = por %p185, %p186
      %s188 = ssub.s32 %s18, %s25
      %p189 = scmp.eq.s32.totalorder %s188, 0
      %s191 = sadd.s32 %s190, 1
      %s192 = scalar_select %p189, %s190, %s191
      %p195 = pneg %p189
      %p196 = scmp.eq.s32.totalorder %s18, 1
      %p197 = por %p195, %p196
      %p198 = scmp.ne.s32.totalorder %s190, %s193
      %p199 = scmp.eq.s32.totalorder %s18, 0
      %p200 = por %p198, %p199
      %p201 = scmp.ne.s32.totalorder %s190, %s193
      %p202 = scmp.eq.s32.totalorder %s23, 1
      %p203 = por %p201, %p202
      %p204 = scmp.ne.s32.totalorder %s193, %s194
      %p205 = scmp.eq.s32.totalorder %s23, 0
      %p206 = por %p204, %p205
      %p207 = scmp.ne.s32.totalorder %s193, %s194
      %p208 = scmp.eq.s32.totalorder %s24, 1
      %p209 = por %p207, %p208
      %p211 = scmp.ne.s32.totalorder %s194, %s210
      %p212 = scmp.eq.s32.totalorder %s24, 0
      %p213 = por %p211, %p212
      %p214 = scmp.le.s32.totalorder 1, %s18
      %p215 = scmp.lt.s32.totalorder %s18, 3
      %p216 = pnand %p214, %p215
      %p217 = pneg %p216
      // Predicated region
      $region9: #{confidnet8_forward.1} parent=5 // pred_check
        _
      $region10: #{confidnet8_forward.1} parent=5 // pred_check_branch
        %219 = sbr.rel (%p216) target = $region12
      $region11: #{confidnet8_forward.1} parent=5 // pred_region
        %s220 = ssub.s32 %s18, 1
        // Predicated region
        $region13: #{confidnet8_forward.1} parent=11 // pred_check
          %p221 = pneg %p91
        $region14: #{confidnet8_forward.1} parent=11 // pred_check_branch
          %223 = sbr.rel (%p221) target = $region16
        $region15: #{confidnet8_forward.1} parent=11 // pred_region
          %s225 = ssub.s32 512, 512
          %226 = vsyncadd [#allocation4], %s225
          %s227 = sshll.u32 [#allocation3], 4
          %s228 = int_to_ptr.vmem [resolvable:$true] %s227
          %233 = dma.hbm_to_vmem [thread:$0]  %s2, 512, %s228, [#allocation4], 128, 128, 8
        $region16: #{confidnet8_forward.1} parent=11 // pred_fallthru
          _
        // Predicated region
        $region17: #{confidnet8_forward.1} parent=11 // pred_check
          %p234 = pneg %p112
        $region18: #{confidnet8_forward.1} parent=11 // pred_check_branch
          %236 = sbr.rel (%p234) target = $region20
        $region19: #{confidnet8_forward.1} parent=11 // pred_region
          %s238 = ssub.s32 24576, 24576
          %239 = vsyncadd [#allocation6], %s238
          %s240 = sshll.u32 [#allocation5], 4
          %s241 = int_to_ptr.vmem [resolvable:$true] %s240
          %246 = dma.hbm_to_vmem [thread:$0]  %s3, 24576, %s241, [#allocation6], 128, 128, 8
        $region20: #{confidnet8_forward.1} parent=11 // pred_fallthru
          _
        // Predicated region
        $region21: #{confidnet8_forward.1} parent=11 // pred_check
          %p247 = pneg %p133
        $region22: #{confidnet8_forward.1} parent=11 // pred_check_branch
          %249 = sbr.rel (%p247) target = $region24
        $region23: #{confidnet8_forward.1} parent=11 // pred_region
          _
        $region24: #{confidnet8_forward.1} parent=11 // pred_fallthru
          _
        // Predicated region
        $region25: #{confidnet8_forward.1} parent=11 // pred_check
          %p250 = pneg %p154
        $region26: #{confidnet8_forward.1} parent=11 // pred_check_branch
          %252 = sbr.rel (%p250) target = $region28
        $region27: #{confidnet8_forward.1} parent=11 // pred_region
          _
        $region28: #{confidnet8_forward.1} parent=11 // pred_fallthru
          _
      $region12: #{confidnet8_forward.1} parent=5 // pred_fallthru
        _
      %p253 = scmp.lt.s32.totalorder %s18, 2
      // Predicated region
      $region29: #{confidnet8_forward.1} parent=5 // pred_check
        %p254 = pneg %p253
      $region30: #{confidnet8_forward.1} parent=5 // pred_check_branch
        %256 = sbr.rel (%p254) target = $region32
      $region31: #{confidnet8_forward.1} parent=5 // pred_region
        // Predicated region
        $region33: #{confidnet8_forward.1} parent=31 // pred_check
          %p257 = pneg %p38
        $region34: #{confidnet8_forward.1} parent=31 // pred_check_branch
          %259 = sbr.rel (%p257) target = $region36
        $region35: #{confidnet8_forward.1} parent=31 // pred_region
          %p260 = scmp.lt.s32.totalorder %s18, 1
          %s261 = scalar_select %p260, %s18, 1
          %s262 = smul.addr %s261, 8
          %s263 = scalar_lea.vmem %s0, %s262
        $region36: #{confidnet8_forward.1} parent=31 // pred_fallthru
          _
        // Predicated region
        $region37: #{confidnet8_forward.1} parent=31 // pred_check
          %p264 = pneg %p64
        $region38: #{confidnet8_forward.1} parent=31 // pred_check_branch
          %266 = sbr.rel (%p264) target = $region40
        $region39: #{confidnet8_forward.1} parent=31 // pred_region
          %p267 = scmp.lt.s32.totalorder %s18, 1
          %s268 = scalar_select %p267, %s18, 1
          %s269 = smul.addr %s268, 8
          %s270 = scalar_lea.vmem %s1, %s269
        $region40: #{confidnet8_forward.1} parent=31 // pred_fallthru
          _
      $region32: #{confidnet8_forward.1} parent=5 // pred_fallthru
        _
      %p271 = scmp.le.s32.totalorder 1, %s18
      %p272 = scmp.lt.s32.totalorder %s18, 3
      %p273 = pnand %p271, %p272
      %p274 = pneg %p273
      // Predicated region
      $region41: #{confidnet8_forward.1} parent=5 // pred_check
        _
      $region42: #{confidnet8_forward.1} parent=5 // pred_check_branch
        %276 = sbr.rel (%p273) target = $region44
      $region43: #{confidnet8_forward.1} parent=5 // pred_region
        %s277 = ssub.s32 %s18, 1
        // Predicated region
        $region45: #{confidnet8_forward.1} parent=43 // pred_check
          %p278 = pneg %p91
        $region46: #{confidnet8_forward.1} parent=43 // pred_check_branch
          %280 = sbr.rel (%p278) target = $region48
        $region47: #{confidnet8_forward.1} parent=43 // pred_region
          %281 = dma.done [#allocation4], 512
        $region48: #{confidnet8_forward.1} parent=43 // pred_fallthru
          _
        // Predicated region
        $region49: #{confidnet8_forward.1} parent=43 // pred_check
          %p282 = pneg %p112
        $region50: #{confidnet8_forward.1} parent=43 // pred_check_branch
          %284 = sbr.rel (%p282) target = $region52
        $region51: #{confidnet8_forward.1} parent=43 // pred_region
          %285 = dma.done [#allocation6], 24576
        $region52: #{confidnet8_forward.1} parent=43 // pred_fallthru
          _
        %p286 = scmp.lt.s32.totalorder %s23, 1
        %s287 = scalar_select %p286, %s23, 1
        %s288 = smul.addr %s287, 8
        %s289 = scalar_lea.vmem %s0, %s288
        %p290 = pneg %p44
        %p291 = pneg %p41
        %p292 = scmp.lt.s32.totalorder %s23, 1
        %s293 = scalar_select %p292, %s23, 1
        %s294 = smul.addr %s293, 8
        %s295 = scalar_lea.vmem %s1, %s294
        %p296 = pneg %p70
        %p297 = pneg %p67
        %p298 = pneg %p91
        %p299 = pneg %p88
        %p300 = pneg %p112
        %p301 = pneg %p109
        %p302 = pneg %p133
        %p303 = pneg %p130
        %p304 = pneg %p154
        %p305 = pneg %p151
        %p306 = pneg %p180
        %p307 = pneg %p177
        %p308 = scmp.lt.s32.totalorder %s23, 1
        %s309 = scalar_select %p308, %s23, 1
        %s310 = smul.addr %s309, 8
        %s311 = scalar_lea.vmem %s6, %s310
        %p312 = pneg %p206
        %p313 = pneg %p203
        %p314 = scmp.lt.s32.totalorder %s23, 1
        %s315 = scalar_select %p314, %s23, 1
        %s316 = smul.addr %s315, 8
        %s317 = scalar_lea.vmem %s7, %s316
        %p318 = scmp.lt.s32.totalorder %s23, 1
        %s319 = scalar_select %p318, %s23, 1
        %s320 = smul.addr %s319, 8
        %s321 = scalar_lea.vmem %s0, %s320
        %p322 = scmp.lt.s32.totalorder %s23, 1
        %s323 = scalar_select %p322, %s23, 1
        %s324 = smul.addr %s323, 8
        %s325 = scalar_lea.vmem %s1, %s324
        %p326 = scmp.lt.s32.totalorder %s23, 1
        %s327 = scalar_select %p326, %s23, 1
        %s328 = smul.addr %s327, 8
        %s329 = scalar_lea.vmem %s6, %s328
        %p330 = scmp.lt.s32.totalorder %s23, 1
        %s331 = scalar_select %p330, %s23, 1
        %s332 = smul.addr %s331, 8
        %s333 = scalar_lea.vmem %s7, %s332
        %v335 = vld [vmem:[%s4] sm:$0xff]
        %v336 = vld [vmem:[%s4 + $0x8] sm:$0xff]
        %v337 = vld [vmem:[%s321] sm:$0xff]
        %v338 = vpack.c.bf16 %v337, %v337
        %v339 = vld [vmem:[#allocation3] sm:$0xff]
        %v340 = vld [vmem:[#allocation3 + $0x8] sm:$0xff]
        %v341 = vld [vmem:[#allocation3 + $0x10] sm:$0xff]
        %v342 = vld [vmem:[#allocation3 + $0x18] sm:$0xff]
        %v343 = vlaneseq
        %v344 = vshrl.u32 %v343, 7
        %v345 = vsub.s32 0, %v344
        %v346 = vrot.slane %v335, %v345
        %v347 = vlaneseq
        %v348 = vshrl.u32 %v347, 7
        %v349 = vsub.s32 0, %v348
        %v350 = vrot.slane %v336, %v349
        %v355 = vunpack.c.l.b16 %v339
        %v356 = vunpack.c.h.b16 %v339
        %v357 = vunpack.c.l.b16 %v340
        %v358 = vunpack.c.h.b16 %v340
        %v359 = vunpack.c.l.b16 %v341
        %v360 = vunpack.c.h.b16 %v341
        %v361 = vunpack.c.l.b16 %v342
        %v362 = vunpack.c.h.b16 %v342
        %v363 = vpack.c.b16 %v357, %v355
        %v364 = vpack.c.b16 %v358, %v356
        %v365 = vpack.c.b16 %v361, %v359
        %v366 = vpack.c.b16 %v362, %v360
        %vm371 = vcmask 261120
        %v373 = vsel %vm371, %v338, 0
        %375 = vmatprep.subr.bf16.mxu0 %v364
        %376 = vmatpush1.bf16.msra.mxu0 %v363
        %377 = vmatprep.subr.bf16.mxu0 %v366
        %378 = vmatpush1.bf16.msra.mxu0 %v365
        %379 = vmatprep.subr.bf16.mxu0 0
        %380 = vmatpush1.bf16.msra.mxu0 0
        %381 = vmatprep.subr.bf16.mxu0 0
        %382 = vmatpush1.bf16.msra.mxu0 0
        %383 = vmatprep.subr.bf16.mxu0 0
        %384 = vmatpush1.bf16.msra.mxu0 0
        %385 = vmatprep.subr.bf16.mxu0 0
        %386 = vmatpush1.bf16.msra.mxu0 0
        %387 = vmatprep.subr.bf16.mxu0 0
        %388 = vmatpush1.bf16.msra.mxu0 0
        %389 = vmatprep.subr.bf16.mxu0 0
        %390 = vmatpush1.bf16.msra.mxu0 0
        %391 = vmatprep.subr.bf16.mxu0 0
        %392 = vmatpush1.bf16.msra.mxu0 0
        %393 = vmatprep.subr.bf16.mxu0 0
        %394 = vmatpush1.bf16.msra.mxu0 0
        %395 = vmatprep.subr.bf16.mxu0 0
        %396 = vmatpush1.bf16.msra.mxu0 0
        %397 = vmatprep.subr.bf16.mxu0 0
        %398 = vmatpush1.bf16.msra.mxu0 0
        %399 = vmatprep.subr.bf16.mxu0 0
        %400 = vmatpush1.bf16.msra.mxu0 0
        %401 = vmatprep.subr.bf16.mxu0 0
        %402 = vmatpush1.bf16.msra.mxu0 0
        %403 = vmatprep.subr.bf16.mxu0 0
        %404 = vmatpush1.bf16.msra.mxu0 0
        %405 = vmatprep.subr.bf16.mxu0 0
        %406 = vmatpush1.bf16.msra.mxu0 0
        %407 = vmatprep.mubr.bf16.mxu0 0
        %408 = vmatmul.mubr.bf16.gmra.mrb[0].mxu0 %v373
        %v409 = vpop.f32.mrb[0].mxu0
        %v410 = vadd.f32 %v346, %v409
        %v411 = vpop.f32.mrb[0].mxu0
        %v412 = vadd.f32 %v350, %v411
        %v413 = vpop.f32.mrb[0].mxu0
        %v414 = vpop.f32.mrb[0].mxu0
        %415 = vdwg.mxu0
        %v416 = vmax.f32 %v410, 0.0
        %v417 = vmax.f32 %v412, 0.0
        %v418 = vpack.c.bf16 %v416, %v416
        %v419 = vpack.c.bf16 %v417, %v417
        %v420 = vld [vmem:[#allocation5] sm:$0xff]
        %v421 = vld [vmem:[#allocation5 + $0x8] sm:$0xff]
        %v422 = vld [vmem:[#allocation5 + $0x10] sm:$0xff]
        %v423 = vld [vmem:[#allocation5 + $0x18] sm:$0xff]
        %v424 = vld [vmem:[#allocation5 + $0x20] sm:$0xff]
        %v425 = vld [vmem:[#allocation5 + $0x28] sm:$0xff]
        %v426 = vld [vmem:[#allocation5 + $0x30] sm:$0xff]
        %v427 = vld [vmem:[#allocation5 + $0x38] sm:$0xff]
        %v428 = vld [vmem:[#allocation5 + $0x40] sm:$0xff]
        %v429 = vld [vmem:[#allocation5 + $0x48] sm:$0xff]
        %v430 = vld [vmem:[#allocation5 + $0x50] sm:$0xff]
        %v431 = vld [vmem:[#allocation5 + $0x58] sm:$0xff]
        %v432 = vld [vmem:[#allocation5 + $0x60] sm:$0xff]
        %v433 = vld [vmem:[#allocation5 + $0x68] sm:$0xff]
        %v434 = vld [vmem:[#allocation5 + $0x70] sm:$0xff]
        %v435 = vld [vmem:[#allocation5 + $0x78] sm:$0xff]
        %v436 = vld [vmem:[#allocation5 + $0x80] sm:$0xff]
        %v437 = vld [vmem:[#allocation5 + $0x88] sm:$0xff]
        %v438 = vld [vmem:[#allocation5 + $0x90] sm:$0xff]
        %v439 = vld [vmem:[#allocation5 + $0x98] sm:$0xff]
        %v440 = vld [vmem:[#allocation5 + $0xa0] sm:$0xff]
        %v441 = vld [vmem:[#allocation5 + $0xa8] sm:$0xff]
        %v442 = vld [vmem:[#allocation5 + $0xb0] sm:$0xff]
        %v443 = vld [vmem:[#allocation5 + $0xb8] sm:$0xff]
        %v444 = vld [vmem:[#allocation5 + $0xc0] sm:$0xff]
        %v445 = vld [vmem:[#allocation5 + $0xc8] sm:$0xff]
        %v446 = vld [vmem:[#allocation5 + $0xd0] sm:$0xff]
        %v447 = vld [vmem:[#allocation5 + $0xd8] sm:$0xff]
        %v448 = vld [vmem:[#allocation5 + $0xe0] sm:$0xff]
        %v449 = vld [vmem:[#allocation5 + $0xe8] sm:$0xff]
        %v450 = vld [vmem:[#allocation5 + $0xf0] sm:$0xff]
        %v451 = vld [vmem:[#allocation5 + $0xf8] sm:$0xff]
        %v452 = vlaneseq
        %v453 = vshrl.u32 %v452, 7
        %v454 = vsub.s32 1, %v453
        %v455 = vrot.slane %v335, %v454
        %v456 = vlaneseq
        %v457 = vshrl.u32 %v456, 7
        %v458 = vsub.s32 1, %v457
        %v459 = vrot.slane %v336, %v458
        %v492 = vunpack.c.l.b16 %v420
        %v493 = vunpack.c.h.b16 %v420
        %v494 = vunpack.c.l.b16 %v421
        %v495 = vunpack.c.h.b16 %v421
        %v496 = vunpack.c.l.b16 %v422
        %v497 = vunpack.c.h.b16 %v422
        %v498 = vunpack.c.l.b16 %v423
        %v499 = vunpack.c.h.b16 %v423
        %v500 = vunpack.c.l.b16 %v424
        %v501 = vunpack.c.h.b16 %v424
        %v502 = vunpack.c.l.b16 %v425
        %v503 = vunpack.c.h.b16 %v425
        %v504 = vunpack.c.l.b16 %v426
        %v505 = vunpack.c.h.b16 %v426
        %v506 = vunpack.c.l.b16 %v427
        %v507 = vunpack.c.h.b16 %v427
        %v508 = vunpack.c.l.b16 %v428
        %v509 = vunpack.c.h.b16 %v428
        %v510 = vunpack.c.l.b16 %v429
        %v511 = vunpack.c.h.b16 %v429
        %v512 = vunpack.c.l.b16 %v430
        %v513 = vunpack.c.h.b16 %v430
        %v514 = vunpack.c.l.b16 %v431
        %v515 = vunpack.c.h.b16 %v431
        %v516 = vunpack.c.l.b16 %v432
        %v517 = vunpack.c.h.b16 %v432
        %v518 = vunpack.c.l.b16 %v433
        %v519 = vunpack.c.h.b16 %v433
        %v520 = vunpack.c.l.b16 %v434
        %v521 = vunpack.c.h.b16 %v434
        %v522 = vunpack.c.l.b16 %v435
        %v523 = vunpack.c.h.b16 %v435
        %v524 = vunpack.c.l.b16 %v436
        %v525 = vunpack.c.h.b16 %v436
        %v526 = vunpack.c.l.b16 %v437
        %v527 = vunpack.c.h.b16 %v437
        %v528 = vunpack.c.l.b16 %v438
        %v529 = vunpack.c.h.b16 %v438
        %v530 = vunpack.c.l.b16 %v439
        %v531 = vunpack.c.h.b16 %v439
        %v532 = vunpack.c.l.b16 %v440
        %v533 = vunpack.c.h.b16 %v440
        %v534 = vunpack.c.l.b16 %v441
        %v535 = vunpack.c.h.b16 %v441
        %v536 = vunpack.c.l.b16 %v442
        %v537 = vunpack.c.h.b16 %v442
        %v538 = vunpack.c.l.b16 %v443
        %v539 = vunpack.c.h.b16 %v443
        %v540 = vunpack.c.l.b16 %v444
        %v541 = vunpack.c.h.b16 %v444
        %v542 = vunpack.c.l.b16 %v445
        %v543 = vunpack.c.h.b16 %v445
        %v544 = vunpack.c.l.b16 %v446
        %v545 = vunpack.c.h.b16 %v446
        %v546 = vunpack.c.l.b16 %v447
        %v547 = vunpack.c.h.b16 %v447
        %v548 = vunpack.c.l.b16 %v448
        %v549 = vunpack.c.h.b16 %v448
        %v550 = vunpack.c.l.b16 %v449
        %v551 = vunpack.c.h.b16 %v449
        %v552 = vunpack.c.l.b16 %v450
        %v553 = vunpack.c.h.b16 %v450
        %v554 = vunpack.c.l.b16 %v451
        %v555 = vunpack.c.h.b16 %v451
        %v556 = vpack.c.b16 %v494, %v492
        %v557 = vpack.c.b16 %v495, %v493
        %v558 = vpack.c.b16 %v498, %v496
        %v559 = vpack.c.b16 %v499, %v497
        %v560 = vpack.c.b16 %v502, %v500
        %v561 = vpack.c.b16 %v503, %v501
        %v562 = vpack.c.b16 %v506, %v504
        %v563 = vpack.c.b16 %v507, %v505
        %v564 = vpack.c.b16 %v510, %v508
        %v565 = vpack.c.b16 %v511, %v509
        %v566 = vpack.c.b16 %v514, %v512
        %v567 = vpack.c.b16 %v515, %v513
        %v568 = vpack.c.b16 %v518, %v516
        %v569 = vpack.c.b16 %v519, %v517
        %v570 = vpack.c.b16 %v522, %v520
        %v571 = vpack.c.b16 %v523, %v521
        %v572 = vpack.c.b16 %v526, %v524
        %v573 = vpack.c.b16 %v527, %v525
        %v574 = vpack.c.b16 %v530, %v528
        %v575 = vpack.c.b16 %v531, %v529
        %v576 = vpack.c.b16 %v534, %v532
        %v577 = vpack.c.b16 %v535, %v533
        %v578 = vpack.c.b16 %v538, %v536
        %v579 = vpack.c.b16 %v539, %v537
        %v580 = vpack.c.b16 %v542, %v540
        %v581 = vpack.c.b16 %v543, %v541
        %v582 = vpack.c.b16 %v546, %v544
        %v583 = vpack.c.b16 %v547, %v545
        %v584 = vpack.c.b16 %v550, %v548
        %v585 = vpack.c.b16 %v551, %v549
        %v586 = vpack.c.b16 %v554, %v552
        %v587 = vpack.c.b16 %v555, %v553
        %620 = vmatprep.subr.bf16.mxu0 %v557
        %621 = vmatpush1.bf16.msra.mxu0 %v556
        %622 = vmatprep.subr.bf16.mxu0 %v559
        %623 = vmatpush1.bf16.msra.mxu0 %v558
        %624 = vmatprep.subr.bf16.mxu0 %v561
        %625 = vmatpush1.bf16.msra.mxu0 %v560
        %626 = vmatprep.subr.bf16.mxu0 %v563
        %627 = vmatpush1.bf16.msra.mxu0 %v562
        %628 = vmatprep.subr.bf16.mxu0 %v565
        %629 = vmatpush1.bf16.msra.mxu0 %v564
        %630 = vmatprep.subr.bf16.mxu0 %v567
        %631 = vmatpush1.bf16.msra.mxu0 %v566
        %632 = vmatprep.subr.bf16.mxu0 %v569
        %633 = vmatpush1.bf16.msra.mxu0 %v568
        %634 = vmatprep.subr.bf16.mxu0 %v571
        %635 = vmatpush1.bf16.msra.mxu0 %v570
        %636 = vmatprep.subr.bf16.mxu0 %v573
        %637 = vmatpush1.bf16.msra.mxu0 %v572
        %638 = vmatprep.subr.bf16.mxu0 %v575
        %639 = vmatpush1.bf16.msra.mxu0 %v574
        %640 = vmatprep.subr.bf16.mxu0 %v577
        %641 = vmatpush1.bf16.msra.mxu0 %v576
        %642 = vmatprep.subr.bf16.mxu0 %v579
        %643 = vmatpush1.bf16.msra.mxu0 %v578
        %644 = vmatprep.subr.bf16.mxu0 %v581
        %645 = vmatpush1.bf16.msra.mxu0 %v580
        %646 = vmatprep.subr.bf16.mxu0 %v583
        %647 = vmatpush1.bf16.msra.mxu0 %v582
        %648 = vmatprep.subr.bf16.mxu0 %v585
        %649 = vmatpush1.bf16.msra.mxu0 %v584
        %650 = vmatprep.subr.bf16.mxu0 %v587
        %651 = vmatpush1.bf16.msra.mxu0 %v586
        %652 = vmatprep.mubr.bf16.mxu0 %v419
        %653 = vmatmul.mubr.bf16.gmra.mrb[0].mxu0 %v418
        %v654 = vpop.f32.mrb[0].mxu0
        %v655 = vadd.f32 %v455, %v654
        %v656 = vpop.f32.mrb[0].mxu0
        %v657 = vadd.f32 %v459, %v656
        %v658 = vpop.f32.mrb[0].mxu0
        %v659 = vpop.f32.mrb[0].mxu0
        %660 = vdwg.mxu0
        %v661 = vmax.f32 %v655, 0.0
        %v662 = vmax.f32 %v657, 0.0
        %v663 = vpack.c.bf16 %v661, %v661
        %v664 = vpack.c.bf16 %v662, %v662
        %s665 = scalar_lea.vmem [#allocation5], 256
        %v666 = vld [vmem:[%s665] sm:$0xff]
        %v667 = vld [vmem:[%s665 + $0x8] sm:$0xff]
        %v668 = vld [vmem:[%s665 + $0x10] sm:$0xff]
        %v669 = vld [vmem:[%s665 + $0x18] sm:$0xff]
        %v670 = vld [vmem:[%s665 + $0x20] sm:$0xff]
        %v671 = vld [vmem:[%s665 + $0x28] sm:$0xff]
        %v672 = vld [vmem:[%s665 + $0x30] sm:$0xff]
        %v673 = vld [vmem:[%s665 + $0x38] sm:$0xff]
        %v674 = vld [vmem:[%s665 + $0x40] sm:$0xff]
        %v675 = vld [vmem:[%s665 + $0x48] sm:$0xff]
        %v676 = vld [vmem:[%s665 + $0x50] sm:$0xff]
        %v677 = vld [vmem:[%s665 + $0x58] sm:$0xff]
        %v678 = vld [vmem:[%s665 + $0x60] sm:$0xff]
        %v679 = vld [vmem:[%s665 + $0x68] sm:$0xff]
        %v680 = vld [vmem:[%s665 + $0x70] sm:$0xff]
        %v681 = vld [vmem:[%s665 + $0x78] sm:$0xff]
        %v682 = vld [vmem:[%s665 + $0x80] sm:$0xff]
        %v683 = vld [vmem:[%s665 + $0x88] sm:$0xff]
        %v684 = vld [vmem:[%s665 + $0x90] sm:$0xff]
        %v685 = vld [vmem:[%s665 + $0x98] sm:$0xff]
        %v686 = vld [vmem:[%s665 + $0xa0] sm:$0xff]
        %v687 = vld [vmem:[%s665 + $0xa8] sm:$0xff]
        %v688 = vld [vmem:[%s665 + $0xb0] sm:$0xff]
        %v689 = vld [vmem:[%s665 + $0xb8] sm:$0xff]
        %v690 = vld [vmem:[%s665 + $0xc0] sm:$0xff]
        %v691 = vld [vmem:[%s665 + $0xc8] sm:$0xff]
        %v692 = vld [vmem:[%s665 + $0xd0] sm:$0xff]
        %v693 = vld [vmem:[%s665 + $0xd8] sm:$0xff]
        %v694 = vld [vmem:[%s665 + $0xe0] sm:$0xff]
        %v695 = vld [vmem:[%s665 + $0xe8] sm:$0xff]
        %v696 = vld [vmem:[%s665 + $0xf0] sm:$0xff]
        %v697 = vld [vmem:[%s665 + $0xf8] sm:$0xff]
        %v698 = vlaneseq
        %v699 = vshrl.u32 %v698, 7
        %v700 = vsub.s32 2, %v699
        %v701 = vrot.slane %v335, %v700
        %v702 = vlaneseq
        %v703 = vshrl.u32 %v702, 7
        %v704 = vsub.s32 2, %v703
        %v705 = vrot.slane %v336, %v704
        %v738 = vunpack.c.l.b16 %v666
        %v739 = vunpack.c.h.b16 %v666
        %v740 = vunpack.c.l.b16 %v667
        %v741 = vunpack.c.h.b16 %v667
        %v742 = vunpack.c.l.b16 %v668
        %v743 = vunpack.c.h.b16 %v668
        %v744 = vunpack.c.l.b16 %v669
        %v745 = vunpack.c.h.b16 %v669
        %v746 = vunpack.c.l.b16 %v670
        %v747 = vunpack.c.h.b16 %v670
        %v748 = vunpack.c.l.b16 %v671
        %v749 = vunpack.c.h.b16 %v671
        %v750 = vunpack.c.l.b16 %v672
        %v751 = vunpack.c.h.b16 %v672
        %v752 = vunpack.c.l.b16 %v673
        %v753 = vunpack.c.h.b16 %v673
        %v754 = vunpack.c.l.b16 %v674
        %v755 = vunpack.c.h.b16 %v674
        %v756 = vunpack.c.l.b16 %v675
        %v757 = vunpack.c.h.b16 %v675
        %v758 = vunpack.c.l.b16 %v676
        %v759 = vunpack.c.h.b16 %v676
        %v760 = vunpack.c.l.b16 %v677
        %v761 = vunpack.c.h.b16 %v677
        %v762 = vunpack.c.l.b16 %v678
        %v763 = vunpack.c.h.b16 %v678
        %v764 = vunpack.c.l.b16 %v679
        %v765 = vunpack.c.h.b16 %v679
        %v766 = vunpack.c.l.b16 %v680
        %v767 = vunpack.c.h.b16 %v680
        %v768 = vunpack.c.l.b16 %v681
        %v769 = vunpack.c.h.b16 %v681
        %v770 = vunpack.c.l.b16 %v682
        %v771 = vunpack.c.h.b16 %v682
        %v772 = vunpack.c.l.b16 %v683
        %v773 = vunpack.c.h.b16 %v683
        %v774 = vunpack.c.l.b16 %v684
        %v775 = vunpack.c.h.b16 %v684
        %v776 = vunpack.c.l.b16 %v685
        %v777 = vunpack.c.h.b16 %v685
        %v778 = vunpack.c.l.b16 %v686
        %v779 = vunpack.c.h.b16 %v686
        %v780 = vunpack.c.l.b16 %v687
        %v781 = vunpack.c.h.b16 %v687
        %v782 = vunpack.c.l.b16 %v688
        %v783 = vunpack.c.h.b16 %v688
        %v784 = vunpack.c.l.b16 %v689
        %v785 = vunpack.c.h.b16 %v689
        %v786 = vunpack.c.l.b16 %v690
        %v787 = vunpack.c.h.b16 %v690
        %v788 = vunpack.c.l.b16 %v691
        %v789 = vunpack.c.h.b16 %v691
        %v790 = vunpack.c.l.b16 %v692
        %v791 = vunpack.c.h.b16 %v692
        %v792 = vunpack.c.l.b16 %v693
        %v793 = vunpack.c.h.b16 %v693
        %v794 = vunpack.c.l.b16 %v694
        %v795 = vunpack.c.h.b16 %v694
        %v796 = vunpack.c.l.b16 %v695
        %v797 = vunpack.c.h.b16 %v695
        %v798 = vunpack.c.l.b16 %v696
        %v799 = vunpack.c.h.b16 %v696
        %v800 = vunpack.c.l.b16 %v697
        %v801 = vunpack.c.h.b16 %v697
        %v802 = vpack.c.b16 %v740, %v738
        %v803 = vpack.c.b16 %v741, %v739
        %v804 = vpack.c.b16 %v744, %v742
        %v805 = vpack.c.b16 %v745, %v743
        %v806 = vpack.c.b16 %v748, %v746
        %v807 = vpack.c.b16 %v749, %v747
        %v808 = vpack.c.b16 %v752, %v750
        %v809 = vpack.c.b16 %v753, %v751
        %v810 = vpack.c.b16 %v756, %v754
        %v811 = vpack.c.b16 %v757, %v755
        %v812 = vpack.c.b16 %v760, %v758
        %v813 = vpack.c.b16 %v761, %v759
        %v814 = vpack.c.b16 %v764, %v762
        %v815 = vpack.c.b16 %v765, %v763
        %v816 = vpack.c.b16 %v768, %v766
        %v817 = vpack.c.b16 %v769, %v767
        %v818 = vpack.c.b16 %v772, %v770
        %v819 = vpack.c.b16 %v773, %v771
        %v820 = vpack.c.b16 %v776, %v774
        %v821 = vpack.c.b16 %v777, %v775
        %v822 = vpack.c.b16 %v780, %v778
        %v823 = vpack.c.b16 %v781, %v779
        %v824 = vpack.c.b16 %v784, %v782
        %v825 = vpack.c.b16 %v785, %v783
        %v826 = vpack.c.b16 %v788, %v786
        %v827 = vpack.c.b16 %v789, %v787
        %v828 = vpack.c.b16 %v792, %v790
        %v829 = vpack.c.b16 %v793, %v791
        %v830 = vpack.c.b16 %v796, %v794
        %v831 = vpack.c.b16 %v797, %v795
        %v832 = vpack.c.b16 %v800, %v798
        %v833 = vpack.c.b16 %v801, %v799
        %866 = vmatprep.subr.bf16.mxu0 %v803
        %867 = vmatpush1.bf16.msra.mxu0 %v802
        %868 = vmatprep.subr.bf16.mxu0 %v805
        %869 = vmatpush1.bf16.msra.mxu0 %v804
        %870 = vmatprep.subr.bf16.mxu0 %v807
        %871 = vmatpush1.bf16.msra.mxu0 %v806
        %872 = vmatprep.subr.bf16.mxu0 %v809
        %873 = vmatpush1.bf16.msra.mxu0 %v808
        %874 = vmatprep.subr.bf16.mxu0 %v811
        %875 = vmatpush1.bf16.msra.mxu0 %v810
        %876 = vmatprep.subr.bf16.mxu0 %v813
        %877 = vmatpush1.bf16.msra.mxu0 %v812
        %878 = vmatprep.subr.bf16.mxu0 %v815
        %879 = vmatpush1.bf16.msra.mxu0 %v814
        %880 = vmatprep.subr.bf16.mxu0 %v817
        %881 = vmatpush1.bf16.msra.mxu0 %v816
        %882 = vmatprep.subr.bf16.mxu0 %v819
        %883 = vmatpush1.bf16.msra.mxu0 %v818
        %884 = vmatprep.subr.bf16.mxu0 %v821
        %885 = vmatpush1.bf16.msra.mxu0 %v820
        %886 = vmatprep.subr.bf16.mxu0 %v823
        %887 = vmatpush1.bf16.msra.mxu0 %v822
        %888 = vmatprep.subr.bf16.mxu0 %v825
        %889 = vmatpush1.bf16.msra.mxu0 %v824
        %890 = vmatprep.subr.bf16.mxu0 %v827
        %891 = vmatpush1.bf16.msra.mxu0 %v826
        %892 = vmatprep.subr.bf16.mxu0 %v829
        %893 = vmatpush1.bf16.msra.mxu0 %v828
        %894 = vmatprep.subr.bf16.mxu0 %v831
        %895 = vmatpush1.bf16.msra.mxu0 %v830
        %896 = vmatprep.subr.bf16.mxu0 %v833
        %897 = vmatpush1.bf16.msra.mxu0 %v832
        %898 = vmatprep.mubr.bf16.mxu0 %v664
        %899 = vmatmul.mubr.bf16.gmra.mrb[0].mxu0 %v663
        %v900 = vpop.f32.mrb[0].mxu0
        %v901 = vadd.f32 %v701, %v900
        %v902 = vpop.f32.mrb[0].mxu0
        %v903 = vadd.f32 %v705, %v902
        %v904 = vpop.f32.mrb[0].mxu0
        %v905 = vpop.f32.mrb[0].mxu0
        %906 = vdwg.mxu0
        %v907 = vmax.f32 %v901, 0.0
        %v908 = vmax.f32 %v903, 0.0
        %v909 = vpack.c.bf16 %v907, %v907
        %v910 = vpack.c.bf16 %v908, %v908
        %s911 = scalar_lea.vmem [#allocation5], 512
        %v912 = vld [vmem:[%s911] sm:$0xff]
        %v913 = vld [vmem:[%s911 + $0x8] sm:$0xff]
        %v914 = vld [vmem:[%s911 + $0x10] sm:$0xff]
        %v915 = vld [vmem:[%s911 + $0x18] sm:$0xff]
        %v916 = vld [vmem:[%s911 + $0x20] sm:$0xff]
        %v917 = vld [vmem:[%s911 + $0x28] sm:$0xff]
        %v918 = vld [vmem:[%s911 + $0x30] sm:$0xff]
        %v919 = vld [vmem:[%s911 + $0x38] sm:$0xff]
        %v920 = vld [vmem:[%s911 + $0x40] sm:$0xff]
        %v921 = vld [vmem:[%s911 + $0x48] sm:$0xff]
        %v922 = vld [vmem:[%s911 + $0x50] sm:$0xff]
        %v923 = vld [vmem:[%s911 + $0x58] sm:$0xff]
        %v924 = vld [vmem:[%s911 + $0x60] sm:$0xff]
        %v925 = vld [vmem:[%s911 + $0x68] sm:$0xff]
        %v926 = vld [vmem:[%s911 + $0x70] sm:$0xff]
        %v927 = vld [vmem:[%s911 + $0x78] sm:$0xff]
        %v928 = vld [vmem:[%s911 + $0x80] sm:$0xff]
        %v929 = vld [vmem:[%s911 + $0x88] sm:$0xff]
        %v930 = vld [vmem:[%s911 + $0x90] sm:$0xff]
        %v931 = vld [vmem:[%s911 + $0x98] sm:$0xff]
        %v932 = vld [vmem:[%s911 + $0xa0] sm:$0xff]
        %v933 = vld [vmem:[%s911 + $0xa8] sm:$0xff]
        %v934 = vld [vmem:[%s911 + $0xb0] sm:$0xff]
        %v935 = vld [vmem:[%s911 + $0xb8] sm:$0xff]
        %v936 = vld [vmem:[%s911 + $0xc0] sm:$0xff]
        %v937 = vld [vmem:[%s911 + $0xc8] sm:$0xff]
        %v938 = vld [vmem:[%s911 + $0xd0] sm:$0xff]
        %v939 = vld [vmem:[%s911 + $0xd8] sm:$0xff]
        %v940 = vld [vmem:[%s911 + $0xe0] sm:$0xff]
        %v941 = vld [vmem:[%s911 + $0xe8] sm:$0xff]
        %v942 = vld [vmem:[%s911 + $0xf0] sm:$0xff]
        %v943 = vld [vmem:[%s911 + $0xf8] sm:$0xff]
        %v944 = vlaneseq
        %v945 = vshrl.u32 %v944, 7
        %v946 = vsub.s32 3, %v945
        %v947 = vrot.slane %v335, %v946
        %v948 = vlaneseq
        %v949 = vshrl.u32 %v948, 7
        %v950 = vsub.s32 3, %v949
        %v951 = vrot.slane %v336, %v950
        %v984 = vunpack.c.l.b16 %v912
        %v985 = vunpack.c.h.b16 %v912
        %v986 = vunpack.c.l.b16 %v913
        %v987 = vunpack.c.h.b16 %v913
        %v988 = vunpack.c.l.b16 %v914
        %v989 = vunpack.c.h.b16 %v914
        %v990 = vunpack.c.l.b16 %v915
        %v991 = vunpack.c.h.b16 %v915
        %v992 = vunpack.c.l.b16 %v916
        %v993 = vunpack.c.h.b16 %v916
        %v994 = vunpack.c.l.b16 %v917
        %v995 = vunpack.c.h.b16 %v917
        %v996 = vunpack.c.l.b16 %v918
        %v997 = vunpack.c.h.b16 %v918
        %v998 = vunpack.c.l.b16 %v919
        %v999 = vunpack.c.h.b16 %v919
        %v1000 = vunpack.c.l.b16 %v920
        %v1001 = vunpack.c.h.b16 %v920
        %v1002 = vunpack.c.l.b16 %v921
        %v1003 = vunpack.c.h.b16 %v921
        %v1004 = vunpack.c.l.b16 %v922
        %v1005 = vunpack.c.h.b16 %v922
        %v1006 = vunpack.c.l.b16 %v923
        %v1007 = vunpack.c.h.b16 %v923
        %v1008 = vunpack.c.l.b16 %v924
        %v1009 = vunpack.c.h.b16 %v924
        %v1010 = vunpack.c.l.b16 %v925
        %v1011 = vunpack.c.h.b16 %v925
        %v1012 = vunpack.c.l.b16 %v926
        %v1013 = vunpack.c.h.b16 %v926
        %v1014 = vunpack.c.l.b16 %v927
        %v1015 = vunpack.c.h.b16 %v927
        %v1016 = vunpack.c.l.b16 %v928
        %v1017 = vunpack.c.h.b16 %v928
        %v1018 = vunpack.c.l.b16 %v929
        %v1019 = vunpack.c.h.b16 %v929
        %v1020 = vunpack.c.l.b16 %v930
        %v1021 = vunpack.c.h.b16 %v930
        %v1022 = vunpack.c.l.b16 %v931
        %v1023 = vunpack.c.h.b16 %v931
        %v1024 = vunpack.c.l.b16 %v932
        %v1025 = vunpack.c.h.b16 %v932
        %v1026 = vunpack.c.l.b16 %v933
        %v1027 = vunpack.c.h.b16 %v933
        %v1028 = vunpack.c.l.b16 %v934
        %v1029 = vunpack.c.h.b16 %v934
        %v1030 = vunpack.c.l.b16 %v935
        %v1031 = vunpack.c.h.b16 %v935
        %v1032 = vunpack.c.l.b16 %v936
        %v1033 = vunpack.c.h.b16 %v936
        %v1034 = vunpack.c.l.b16 %v937
        %v1035 = vunpack.c.h.b16 %v937
        %v1036 = vunpack.c.l.b16 %v938
        %v1037 = vunpack.c.h.b16 %v938
        %v1038 = vunpack.c.l.b16 %v939
        %v1039 = vunpack.c.h.b16 %v939
        %v1040 = vunpack.c.l.b16 %v940
        %v1041 = vunpack.c.h.b16 %v940
        %v1042 = vunpack.c.l.b16 %v941
        %v1043 = vunpack.c.h.b16 %v941
        %v1044 = vunpack.c.l.b16 %v942
        %v1045 = vunpack.c.h.b16 %v942
        %v1046 = vunpack.c.l.b16 %v943
        %v1047 = vunpack.c.h.b16 %v943
        %v1048 = vpack.c.b16 %v986, %v984
        %v1049 = vpack.c.b16 %v987, %v985
        %v1050 = vpack.c.b16 %v990, %v988
        %v1051 = vpack.c.b16 %v991, %v989
        %v1052 = vpack.c.b16 %v994, %v992
        %v1053 = vpack.c.b16 %v995, %v993
        %v1054 = vpack.c.b16 %v998, %v996
        %v1055 = vpack.c.b16 %v999, %v997
        %v1056 = vpack.c.b16 %v1002, %v1000
        %v1057 = vpack.c.b16 %v1003, %v1001
        %v1058 = vpack.c.b16 %v1006, %v1004
        %v1059 = vpack.c.b16 %v1007, %v1005
        %v1060 = vpack.c.b16 %v1010, %v1008
        %v1061 = vpack.c.b16 %v1011, %v1009
        %v1062 = vpack.c.b16 %v1014, %v1012
        %v1063 = vpack.c.b16 %v1015, %v1013
        %v1064 = vpack.c.b16 %v1018, %v1016
        %v1065 = vpack.c.b16 %v1019, %v1017
        %v1066 = vpack.c.b16 %v1022, %v1020
        %v1067 = vpack.c.b16 %v1023, %v1021
        %v1068 = vpack.c.b16 %v1026, %v1024
        %v1069 = vpack.c.b16 %v1027, %v1025
        %v1070 = vpack.c.b16 %v1030, %v1028
        %v1071 = vpack.c.b16 %v1031, %v1029
        %v1072 = vpack.c.b16 %v1034, %v1032
        %v1073 = vpack.c.b16 %v1035, %v1033
        %v1074 = vpack.c.b16 %v1038, %v1036
        %v1075 = vpack.c.b16 %v1039, %v1037
        %v1076 = vpack.c.b16 %v1042, %v1040
        %v1077 = vpack.c.b16 %v1043, %v1041
        %v1078 = vpack.c.b16 %v1046, %v1044
        %v1079 = vpack.c.b16 %v1047, %v1045
        %1112 = vmatprep.subr.bf16.mxu0 %v1049
        %1113 = vmatpush1.bf16.msra.mxu0 %v1048
        %1114 = vmatprep.subr.bf16.mxu0 %v1051
        %1115 = vmatpush1.bf16.msra.mxu0 %v1050
        %1116 = vmatprep.subr.bf16.mxu0 %v1053
        %1117 = vmatpush1.bf16.msra.mxu0 %v1052
        %1118 = vmatprep.subr.bf16.mxu0 %v1055
        %1119 = vmatpush1.bf16.msra.mxu0 %v1054
        %1120 = vmatprep.subr.bf16.mxu0 %v1057
        %1121 = vmatpush1.bf16.msra.mxu0 %v1056
        %1122 = vmatprep.subr.bf16.mxu0 %v1059
        %1123 = vmatpush1.bf16.msra.mxu0 %v1058
        %1124 = vmatprep.subr.bf16.mxu0 %v1061
        %1125 = vmatpush1.bf16.msra.mxu0 %v1060
        %1126 = vmatprep.subr.bf16.mxu0 %v1063
        %1127 = vmatpush1.bf16.msra.mxu0 %v1062
        %1128 = vmatprep.subr.bf16.mxu0 %v1065
        %1129 = vmatpush1.bf16.msra.mxu0 %v1064
        %1130 = vmatprep.subr.bf16.mxu0 %v1067
        %1131 = vmatpush1.bf16.msra.mxu0 %v1066
        %1132 = vmatprep.subr.bf16.mxu0 %v1069
        %1133 = vmatpush1.bf16.msra.mxu0 %v1068
        %1134 = vmatprep.subr.bf16.mxu0 %v1071
        %1135 = vmatpush1.bf16.msra.mxu0 %v1070
        %1136 = vmatprep.subr.bf16.mxu0 %v1073
        %1137 = vmatpush1.bf16.msra.mxu0 %v1072
        %1138 = vmatprep.subr.bf16.mxu0 %v1075
        %1139 = vmatpush1.bf16.msra.mxu0 %v1074
        %1140 = vmatprep.subr.bf16.mxu0 %v1077
        %1141 = vmatpush1.bf16.msra.mxu0 %v1076
        %1142 = vmatprep.subr.bf16.mxu0 %v1079
        %1143 = vmatpush1.bf16.msra.mxu0 %v1078
        %1144 = vmatprep.mubr.bf16.mxu0 %v910
        %1145 = vmatmul.mubr.bf16.gmra.mrb[0].mxu0 %v909
        %v1146 = vpop.f32.mrb[0].mxu0
        %v1147 = vadd.f32 %v947, %v1146
        %v1148 = vpop.f32.mrb[0].mxu0
        %v1149 = vadd.f32 %v951, %v1148
        %v1150 = vpop.f32.mrb[0].mxu0
        %v1151 = vpop.f32.mrb[0].mxu0
        %1152 = vdwg.mxu0
        %v1153 = vmax.f32 %v1147, 0.0
        %v1154 = vmax.f32 %v1149, 0.0
        %v1155 = vpack.c.bf16 %v1153, %v1153
        %v1156 = vpack.c.bf16 %v1154, %v1154
        %s1157 = scalar_lea.vmem [#allocation5], 768
        %v1158 = vld [vmem:[%s1157] sm:$0xff]
        %v1159 = vld [vmem:[%s1157 + $0x8] sm:$0xff]
        %v1160 = vld [vmem:[%s1157 + $0x10] sm:$0xff]
        %v1161 = vld [vmem:[%s1157 + $0x18] sm:$0xff]
        %v1162 = vld [vmem:[%s1157 + $0x20] sm:$0xff]
        %v1163 = vld [vmem:[%s1157 + $0x28] sm:$0xff]
        %v1164 = vld [vmem:[%s1157 + $0x30] sm:$0xff]
        %v1165 = vld [vmem:[%s1157 + $0x38] sm:$0xff]
        %v1166 = vld [vmem:[%s1157 + $0x40] sm:$0xff]
        %v1167 = vld [vmem:[%s1157 + $0x48] sm:$0xff]
        %v1168 = vld [vmem:[%s1157 + $0x50] sm:$0xff]
        %v1169 = vld [vmem:[%s1157 + $0x58] sm:$0xff]
        %v1170 = vld [vmem:[%s1157 + $0x60] sm:$0xff]
        %v1171 = vld [vmem:[%s1157 + $0x68] sm:$0xff]
        %v1172 = vld [vmem:[%s1157 + $0x70] sm:$0xff]
        %v1173 = vld [vmem:[%s1157 + $0x78] sm:$0xff]
        %v1174 = vld [vmem:[%s1157 + $0x80] sm:$0xff]
        %v1175 = vld [vmem:[%s1157 + $0x88] sm:$0xff]
        %v1176 = vld [vmem:[%s1157 + $0x90] sm:$0xff]
        %v1177 = vld [vmem:[%s1157 + $0x98] sm:$0xff]
        %v1178 = vld [vmem:[%s1157 + $0xa0] sm:$0xff]
        %v1179 = vld [vmem:[%s1157 + $0xa8] sm:$0xff]
        %v1180 = vld [vmem:[%s1157 + $0xb0] sm:$0xff]
        %v1181 = vld [vmem:[%s1157 + $0xb8] sm:$0xff]
        %v1182 = vld [vmem:[%s1157 + $0xc0] sm:$0xff]
        %v1183 = vld [vmem:[%s1157 + $0xc8] sm:$0xff]
        %v1184 = vld [vmem:[%s1157 + $0xd0] sm:$0xff]
        %v1185 = vld [vmem:[%s1157 + $0xd8] sm:$0xff]
        %v1186 = vld [vmem:[%s1157 + $0xe0] sm:$0xff]
        %v1187 = vld [vmem:[%s1157 + $0xe8] sm:$0xff]
        %v1188 = vld [vmem:[%s1157 + $0xf0] sm:$0xff]
        %v1189 = vld [vmem:[%s1157 + $0xf8] sm:$0xff]
        %v1190 = vlaneseq
        %v1191 = vshrl.u32 %v1190, 7
        %v1192 = vsub.s32 4, %v1191
        %v1193 = vrot.slane %v335, %v1192
        %v1194 = vlaneseq
        %v1195 = vshrl.u32 %v1194, 7
        %v1196 = vsub.s32 4, %v1195
        %v1197 = vrot.slane %v336, %v1196
        %v1230 = vunpack.c.l.b16 %v1158
        %v1231 = vunpack.c.h.b16 %v1158
        %v1232 = vunpack.c.l.b16 %v1159
        %v1233 = vunpack.c.h.b16 %v1159
        %v1234 = vunpack.c.l.b16 %v1160
        %v1235 = vunpack.c.h.b16 %v1160
        %v1236 = vunpack.c.l.b16 %v1161
        %v1237 = vunpack.c.h.b16 %v1161
        %v1238 = vunpack.c.l.b16 %v1162
        %v1239 = vunpack.c.h.b16 %v1162
        %v1240 = vunpack.c.l.b16 %v1163
        %v1241 = vunpack.c.h.b16 %v1163
        %v1242 = vunpack.c.l.b16 %v1164
        %v1243 = vunpack.c.h.b16 %v1164
        %v1244 = vunpack.c.l.b16 %v1165
        %v1245 = vunpack.c.h.b16 %v1165
        %v1246 = vunpack.c.l.b16 %v1166
        %v1247 = vunpack.c.h.b16 %v1166
        %v1248 = vunpack.c.l.b16 %v1167
        %v1249 = vunpack.c.h.b16 %v1167
        %v1250 = vunpack.c.l.b16 %v1168
        %v1251 = vunpack.c.h.b16 %v1168
        %v1252 = vunpack.c.l.b16 %v1169
        %v1253 = vunpack.c.h.b16 %v1169
        %v1254 = vunpack.c.l.b16 %v1170
        %v1255 = vunpack.c.h.b16 %v1170
        %v1256 = vunpack.c.l.b16 %v1171
        %v1257 = vunpack.c.h.b16 %v1171
        %v1258 = vunpack.c.l.b16 %v1172
        %v1259 = vunpack.c.h.b16 %v1172
        %v1260 = vunpack.c.l.b16 %v1173
        %v1261 = vunpack.c.h.b16 %v1173
        %v1262 = vunpack.c.l.b16 %v1174
        %v1263 = vunpack.c.h.b16 %v1174
        %v1264 = vunpack.c.l.b16 %v1175
        %v1265 = vunpack.c.h.b16 %v1175
        %v1266 = vunpack.c.l.b16 %v1176
        %v1267 = vunpack.c.h.b16 %v1176
        %v1268 = vunpack.c.l.b16 %v1177
        %v1269 = vunpack.c.h.b16 %v1177
        %v1270 = vunpack.c.l.b16 %v1178
        %v1271 = vunpack.c.h.b16 %v1178
        %v1272 = vunpack.c.l.b16 %v1179
        %v1273 = vunpack.c.h.b16 %v1179
        %v1274 = vunpack.c.l.b16 %v1180
        %v1275 = vunpack.c.h.b16 %v1180
        %v1276 = vunpack.c.l.b16 %v1181
        %v1277 = vunpack.c.h.b16 %v1181
        %v1278 = vunpack.c.l.b16 %v1182
        %v1279 = vunpack.c.h.b16 %v1182
        %v1280 = vunpack.c.l.b16 %v1183
        %v1281 = vunpack.c.h.b16 %v1183
        %v1282 = vunpack.c.l.b16 %v1184
        %v1283 = vunpack.c.h.b16 %v1184
        %v1284 = vunpack.c.l.b16 %v1185
        %v1285 = vunpack.c.h.b16 %v1185
        %v1286 = vunpack.c.l.b16 %v1186
        %v1287 = vunpack.c.h.b16 %v1186
        %v1288 = vunpack.c.l.b16 %v1187
        %v1289 = vunpack.c.h.b16 %v1187
        %v1290 = vunpack.c.l.b16 %v1188
        %v1291 = vunpack.c.h.b16 %v1188
        %v1292 = vunpack.c.l.b16 %v1189
        %v1293 = vunpack.c.h.b16 %v1189
        %v1294 = vpack.c.b16 %v1232, %v1230
        %v1295 = vpack.c.b16 %v1233, %v1231
        %v1296 = vpack.c.b16 %v1236, %v1234
        %v1297 = vpack.c.b16 %v1237, %v1235
        %v1298 = vpack.c.b16 %v1240, %v1238
        %v1299 = vpack.c.b16 %v1241, %v1239
        %v1300 = vpack.c.b16 %v1244, %v1242
        %v1301 = vpack.c.b16 %v1245, %v1243
        %v1302 = vpack.c.b16 %v1248, %v1246
        %v1303 = vpack.c.b16 %v1249, %v1247
        %v1304 = vpack.c.b16 %v1252, %v1250
        %v1305 = vpack.c.b16 %v1253, %v1251
        %v1306 = vpack.c.b16 %v1256, %v1254
        %v1307 = vpack.c.b16 %v1257, %v1255
        %v1308 = vpack.c.b16 %v1260, %v1258
        %v1309 = vpack.c.b16 %v1261, %v1259
        %v1310 = vpack.c.b16 %v1264, %v1262
        %v1311 = vpack.c.b16 %v1265, %v1263
        %v1312 = vpack.c.b16 %v1268, %v1266
        %v1313 = vpack.c.b16 %v1269, %v1267
        %v1314 = vpack.c.b16 %v1272, %v1270
        %v1315 = vpack.c.b16 %v1273, %v1271
        %v1316 = vpack.c.b16 %v1276, %v1274
        %v1317 = vpack.c.b16 %v1277, %v1275
        %v1318 = vpack.c.b16 %v1280, %v1278
        %v1319 = vpack.c.b16 %v1281, %v1279
        %v1320 = vpack.c.b16 %v1284, %v1282
        %v1321 = vpack.c.b16 %v1285, %v1283
        %v1322 = vpack.c.b16 %v1288, %v1286
        %v1323 = vpack.c.b16 %v1289, %v1287
        %v1324 = vpack.c.b16 %v1292, %v1290
        %v1325 = vpack.c.b16 %v1293, %v1291
        %1358 = vmatprep.subr.bf16.mxu0 %v1295
        %1359 = vmatpush1.bf16.msra.mxu0 %v1294
        %1360 = vmatprep.subr.bf16.mxu0 %v1297
        %1361 = vmatpush1.bf16.msra.mxu0 %v1296
        %1362 = vmatprep.subr.bf16.mxu0 %v1299
        %1363 = vmatpush1.bf16.msra.mxu0 %v1298
        %1364 = vmatprep.subr.bf16.mxu0 %v1301
        %1365 = vmatpush1.bf16.msra.mxu0 %v1300
        %1366 = vmatprep.subr.bf16.mxu0 %v1303
        %1367 = vmatpush1.bf16.msra.mxu0 %v1302
        %1368 = vmatprep.subr.bf16.mxu0 %v1305
        %1369 = vmatpush1.bf16.msra.mxu0 %v1304
        %1370 = vmatprep.subr.bf16.mxu0 %v1307
        %1371 = vmatpush1.bf16.msra.mxu0 %v1306
        %1372 = vmatprep.subr.bf16.mxu0 %v1309
        %1373 = vmatpush1.bf16.msra.mxu0 %v1308
        %1374 = vmatprep.subr.bf16.mxu0 %v1311
        %1375 = vmatpush1.bf16.msra.mxu0 %v1310
        %1376 = vmatprep.subr.bf16.mxu0 %v1313
        %1377 = vmatpush1.bf16.msra.mxu0 %v1312
        %1378 = vmatprep.subr.bf16.mxu0 %v1315
        %1379 = vmatpush1.bf16.msra.mxu0 %v1314
        %1380 = vmatprep.subr.bf16.mxu0 %v1317
        %1381 = vmatpush1.bf16.msra.mxu0 %v1316
        %1382 = vmatprep.subr.bf16.mxu0 %v1319
        %1383 = vmatpush1.bf16.msra.mxu0 %v1318
        %1384 = vmatprep.subr.bf16.mxu0 %v1321
        %1385 = vmatpush1.bf16.msra.mxu0 %v1320
        %1386 = vmatprep.subr.bf16.mxu0 %v1323
        %1387 = vmatpush1.bf16.msra.mxu0 %v1322
        %1388 = vmatprep.subr.bf16.mxu0 %v1325
        %1389 = vmatpush1.bf16.msra.mxu0 %v1324
        %1390 = vmatprep.mubr.bf16.mxu0 %v1156
        %1391 = vmatmul.mubr.bf16.gmra.mrb[0].mxu0 %v1155
        %v1392 = vpop.f32.mrb[0].mxu0
        %v1393 = vadd.f32 %v1193, %v1392
        %v1394 = vpop.f32.mrb[0].mxu0
        %v1395 = vadd.f32 %v1197, %v1394
        %v1396 = vpop.f32.mrb[0].mxu0
        %v1397 = vpop.f32.mrb[0].mxu0
        %1398 = vdwg.mxu0
        %v1399 = vmax.f32 %v1393, 0.0
        %v1400 = vmax.f32 %v1395, 0.0
        %v1401 = vpack.c.bf16 %v1399, %v1399
        %v1402 = vpack.c.bf16 %v1400, %v1400
        %s1403 = scalar_lea.vmem [#allocation5], 1024
        %v1404 = vld [vmem:[%s1403] sm:$0xff]
        %v1405 = vld [vmem:[%s1403 + $0x8] sm:$0xff]
        %v1406 = vld [vmem:[%s1403 + $0x10] sm:$0xff]
        %v1407 = vld [vmem:[%s1403 + $0x18] sm:$0xff]
        %v1408 = vld [vmem:[%s1403 + $0x20] sm:$0xff]
        %v1409 = vld [vmem:[%s1403 + $0x28] sm:$0xff]
        %v1410 = vld [vmem:[%s1403 + $0x30] sm:$0xff]
        %v1411 = vld [vmem:[%s1403 + $0x38] sm:$0xff]
        %v1412 = vld [vmem:[%s1403 + $0x40] sm:$0xff]
        %v1413 = vld [vmem:[%s1403 + $0x48] sm:$0xff]
        %v1414 = vld [vmem:[%s1403 + $0x50] sm:$0xff]
        %v1415 = vld [vmem:[%s1403 + $0x58] sm:$0xff]
        %v1416 = vld [vmem:[%s1403 + $0x60] sm:$0xff]
        %v1417 = vld [vmem:[%s1403 + $0x68] sm:$0xff]
        %v1418 = vld [vmem:[%s1403 + $0x70] sm:$0xff]
        %v1419 = vld [vmem:[%s1403 + $0x78] sm:$0xff]
        %v1420 = vld [vmem:[%s1403 + $0x80] sm:$0xff]
        %v1421 = vld [vmem:[%s1403 + $0x88] sm:$0xff]
        %v1422 = vld [vmem:[%s1403 + $0x90] sm:$0xff]
        %v1423 = vld [vmem:[%s1403 + $0x98] sm:$0xff]
        %v1424 = vld [vmem:[%s1403 + $0xa0] sm:$0xff]
        %v1425 = vld [vmem:[%s1403 + $0xa8] sm:$0xff]
        %v1426 = vld [vmem:[%s1403 + $0xb0] sm:$0xff]
        %v1427 = vld [vmem:[%s1403 + $0xb8] sm:$0xff]
        %v1428 = vld [vmem:[%s1403 + $0xc0] sm:$0xff]
        %v1429 = vld [vmem:[%s1403 + $0xc8] sm:$0xff]
        %v1430 = vld [vmem:[%s1403 + $0xd0] sm:$0xff]
        %v1431 = vld [vmem:[%s1403 + $0xd8] sm:$0xff]
        %v1432 = vld [vmem:[%s1403 + $0xe0] sm:$0xff]
        %v1433 = vld [vmem:[%s1403 + $0xe8] sm:$0xff]
        %v1434 = vld [vmem:[%s1403 + $0xf0] sm:$0xff]
        %v1435 = vld [vmem:[%s1403 + $0xf8] sm:$0xff]
        %v1436 = vlaneseq
        %v1437 = vshrl.u32 %v1436, 7
        %v1438 = vsub.s32 5, %v1437
        %v1439 = vrot.slane %v335, %v1438
        %v1440 = vlaneseq
        %v1441 = vshrl.u32 %v1440, 7
        %v1442 = vsub.s32 5, %v1441
        %v1443 = vrot.slane %v336, %v1442
        %v1476 = vunpack.c.l.b16 %v1404
        %v1477 = vunpack.c.h.b16 %v1404
        %v1478 = vunpack.c.l.b16 %v1405
        %v1479 = vunpack.c.h.b16 %v1405
        %v1480 = vunpack.c.l.b16 %v1406
        %v1481 = vunpack.c.h.b16 %v1406
        %v1482 = vunpack.c.l.b16 %v1407
        %v1483 = vunpack.c.h.b16 %v1407
        %v1484 = vunpack.c.l.b16 %v1408
        %v1485 = vunpack.c.h.b16 %v1408
        %v1486 = vunpack.c.l.b16 %v1409
        %v1487 = vunpack.c.h.b16 %v1409
        %v1488 = vunpack.c.l.b16 %v1410
        %v1489 = vunpack.c.h.b16 %v1410
        %v1490 = vunpack.c.l.b16 %v1411
        %v1491 = vunpack.c.h.b16 %v1411
        %v1492 = vunpack.c.l.b16 %v1412
        %v1493 = vunpack.c.h.b16 %v1412
        %v1494 = vunpack.c.l.b16 %v1413
        %v1495 = vunpack.c.h.b16 %v1413
        %v1496 = vunpack.c.l.b16 %v1414
        %v1497 = vunpack.c.h.b16 %v1414
        %v1498 = vunpack.c.l.b16 %v1415
        %v1499 = vunpack.c.h.b16 %v1415
        %v1500 = vunpack.c.l.b16 %v1416
        %v1501 = vunpack.c.h.b16 %v1416
        %v1502 = vunpack.c.l.b16 %v1417
        %v1503 = vunpack.c.h.b16 %v1417
        %v1504 = vunpack.c.l.b16 %v1418
        %v1505 = vunpack.c.h.b16 %v1418
        %v1506 = vunpack.c.l.b16 %v1419
        %v1507 = vunpack.c.h.b16 %v1419
        %v1508 = vunpack.c.l.b16 %v1420
        %v1509 = vunpack.c.h.b16 %v1420
        %v1510 = vunpack.c.l.b16 %v1421
        %v1511 = vunpack.c.h.b16 %v1421
        %v1512 = vunpack.c.l.b16 %v1422
        %v1513 = vunpack.c.h.b16 %v1422
        %v1514 = vunpack.c.l.b16 %v1423
        %v1515 = vunpack.c.h.b16 %v1423
        %v1516 = vunpack.c.l.b16 %v1424
        %v1517 = vunpack.c.h.b16 %v1424
        %v1518 = vunpack.c.l.b16 %v1425
        %v1519 = vunpack.c.h.b16 %v1425
        %v1520 = vunpack.c.l.b16 %v1426
        %v1521 = vunpack.c.h.b16 %v1426
        %v1522 = vunpack.c.l.b16 %v1427
        %v1523 = vunpack.c.h.b16 %v1427
        %v1524 = vunpack.c.l.b16 %v1428
        %v1525 = vunpack.c.h.b16 %v1428
        %v1526 = vunpack.c.l.b16 %v1429
        %v1527 = vunpack.c.h.b16 %v1429
        %v1528 = vunpack.c.l.b16 %v1430
        %v1529 = vunpack.c.h.b16 %v1430
        %v1530 = vunpack.c.l.b16 %v1431
        %v1531 = vunpack.c.h.b16 %v1431
        %v1532 = vunpack.c.l.b16 %v1432
        %v1533 = vunpack.c.h.b16 %v1432
        %v1534 = vunpack.c.l.b16 %v1433
        %v1535 = vunpack.c.h.b16 %v1433
        %v1536 = vunpack.c.l.b16 %v1434
        %v1537 = vunpack.c.h.b16 %v1434
        %v1538 = vunpack.c.l.b16 %v1435
        %v1539 = vunpack.c.h.b16 %v1435
        %v1540 = vpack.c.b16 %v1478, %v1476
        %v1541 = vpack.c.b16 %v1479, %v1477
        %v1542 = vpack.c.b16 %v1482, %v1480
        %v1543 = vpack.c.b16 %v1483, %v1481
        %v1544 = vpack.c.b16 %v1486, %v1484
        %v1545 = vpack.c.b16 %v1487, %v1485
        %v1546 = vpack.c.b16 %v1490, %v1488
        %v1547 = vpack.c.b16 %v1491, %v1489
        %v1548 = vpack.c.b16 %v1494, %v1492
        %v1549 = vpack.c.b16 %v1495, %v1493
        %v1550 = vpack.c.b16 %v1498, %v1496
        %v1551 = vpack.c.b16 %v1499, %v1497
        %v1552 = vpack.c.b16 %v1502, %v1500
        %v1553 = vpack.c.b16 %v1503, %v1501
        %v1554 = vpack.c.b16 %v1506, %v1504
        %v1555 = vpack.c.b16 %v1507, %v1505
        %v1556 = vpack.c.b16 %v1510, %v1508
        %v1557 = vpack.c.b16 %v1511, %v1509
        %v1558 = vpack.c.b16 %v1514, %v1512
        %v1559 = vpack.c.b16 %v1515, %v1513
        %v1560 = vpack.c.b16 %v1518, %v1516
        %v1561 = vpack.c.b16 %v1519, %v1517
        %v1562 = vpack.c.b16 %v1522, %v1520
        %v1563 = vpack.c.b16 %v1523, %v1521
        %v1564 = vpack.c.b16 %v1526, %v1524
        %v1565 = vpack.c.b16 %v1527, %v1525
        %v1566 = vpack.c.b16 %v1530, %v1528
        %v1567 = vpack.c.b16 %v1531, %v1529
        %v1568 = vpack.c.b16 %v1534, %v1532
        %v1569 = vpack.c.b16 %v1535, %v1533
        %v1570 = vpack.c.b16 %v1538, %v1536
        %v1571 = vpack.c.b16 %v1539, %v1537
        %1604 = vmatprep.subr.bf16.mxu0 %v1541
        %1605 = vmatpush1.bf16.msra.mxu0 %v1540
        %1606 = vmatprep.subr.bf16.mxu0 %v1543
        %1607 = vmatpush1.bf16.msra.mxu0 %v1542
        %1608 = vmatprep.subr.bf16.mxu0 %v1545
        %1609 = vmatpush1.bf16.msra.mxu0 %v1544
        %1610 = vmatprep.subr.bf16.mxu0 %v1547
        %1611 = vmatpush1.bf16.msra.mxu0 %v1546
        %1612 = vmatprep.subr.bf16.mxu0 %v1549
        %1613 = vmatpush1.bf16.msra.mxu0 %v1548
        %1614 = vmatprep.subr.bf16.mxu0 %v1551
        %1615 = vmatpush1.bf16.msra.mxu0 %v1550
        %1616 = vmatprep.subr.bf16.mxu0 %v1553
        %1617 = vmatpush1.bf16.msra.mxu0 %v1552
        %1618 = vmatprep.subr.bf16.mxu0 %v1555
        %1619 = vmatpush1.bf16.msra.mxu0 %v1554
        %1620 = vmatprep.subr.bf16.mxu0 %v1557
        %1621 = vmatpush1.bf16.msra.mxu0 %v1556
        %1622 = vmatprep.subr.bf16.mxu0 %v1559
        %1623 = vmatpush1.bf16.msra.mxu0 %v1558
        %1624 = vmatprep.subr.bf16.mxu0 %v1561
        %1625 = vmatpush1.bf16.msra.mxu0 %v1560
        %1626 = vmatprep.subr.bf16.mxu0 %v1563
        %1627 = vmatpush1.bf16.msra.mxu0 %v1562
        %1628 = vmatprep.subr.bf16.mxu0 %v1565
        %1629 = vmatpush1.bf16.msra.mxu0 %v1564
        %1630 = vmatprep.subr.bf16.mxu0 %v1567
        %1631 = vmatpush1.bf16.msra.mxu0 %v1566
        %1632 = vmatprep.subr.bf16.mxu0 %v1569
        %1633 = vmatpush1.bf16.msra.mxu0 %v1568
        %1634 = vmatprep.subr.bf16.mxu0 %v1571
        %1635 = vmatpush1.bf16.msra.mxu0 %v1570
        %1636 = vmatprep.mubr.bf16.mxu0 %v1402
        %1637 = vmatmul.mubr.bf16.gmra.mrb[0].mxu0 %v1401
        %v1638 = vpop.f32.mrb[0].mxu0
        %v1639 = vadd.f32 %v1439, %v1638
        %v1640 = vpop.f32.mrb[0].mxu0
        %v1641 = vadd.f32 %v1443, %v1640
        %v1642 = vpop.f32.mrb[0].mxu0
        %v1643 = vpop.f32.mrb[0].mxu0
        %1644 = vdwg.mxu0
        %v1645 = vmax.f32 %v1639, 0.0
        %v1646 = vmax.f32 %v1641, 0.0
        %v1647 = vpack.c.bf16 %v1645, %v1645
        %v1648 = vpack.c.bf16 %v1646, %v1646
        %s1649 = scalar_lea.vmem [#allocation5], 1280
        %v1650 = vld [vmem:[%s1649] sm:$0xff]
        %v1651 = vld [vmem:[%s1649 + $0x8] sm:$0xff]
        %v1652 = vld [vmem:[%s1649 + $0x10] sm:$0xff]
        %v1653 = vld [vmem:[%s1649 + $0x18] sm:$0xff]
        %v1654 = vld [vmem:[%s1649 + $0x20] sm:$0xff]
        %v1655 = vld [vmem:[%s1649 + $0x28] sm:$0xff]
        %v1656 = vld [vmem:[%s1649 + $0x30] sm:$0xff]
        %v1657 = vld [vmem:[%s1649 + $0x38] sm:$0xff]
        %v1658 = vld [vmem:[%s1649 + $0x40] sm:$0xff]
        %v1659 = vld [vmem:[%s1649 + $0x48] sm:$0xff]
        %v1660 = vld [vmem:[%s1649 + $0x50] sm:$0xff]
        %v1661 = vld [vmem:[%s1649 + $0x58] sm:$0xff]
        %v1662 = vld [vmem:[%s1649 + $0x60] sm:$0xff]
        %v1663 = vld [vmem:[%s1649 + $0x68] sm:$0xff]
        %v1664 = vld [vmem:[%s1649 + $0x70] sm:$0xff]
        %v1665 = vld [vmem:[%s1649 + $0x78] sm:$0xff]
        %v1666 = vld [vmem:[%s1649 + $0x80] sm:$0xff]
        %v1667 = vld [vmem:[%s1649 + $0x88] sm:$0xff]
        %v1668 = vld [vmem:[%s1649 + $0x90] sm:$0xff]
        %v1669 = vld [vmem:[%s1649 + $0x98] sm:$0xff]
        %v1670 = vld [vmem:[%s1649 + $0xa0] sm:$0xff]
        %v1671 = vld [vmem:[%s1649 + $0xa8] sm:$0xff]
        %v1672 = vld [vmem:[%s1649 + $0xb0] sm:$0xff]
        %v1673 = vld [vmem:[%s1649 + $0xb8] sm:$0xff]
        %v1674 = vld [vmem:[%s1649 + $0xc0] sm:$0xff]
        %v1675 = vld [vmem:[%s1649 + $0xc8] sm:$0xff]
        %v1676 = vld [vmem:[%s1649 + $0xd0] sm:$0xff]
        %v1677 = vld [vmem:[%s1649 + $0xd8] sm:$0xff]
        %v1678 = vld [vmem:[%s1649 + $0xe0] sm:$0xff]
        %v1679 = vld [vmem:[%s1649 + $0xe8] sm:$0xff]
        %v1680 = vld [vmem:[%s1649 + $0xf0] sm:$0xff]
        %v1681 = vld [vmem:[%s1649 + $0xf8] sm:$0xff]
        %v1682 = vlaneseq
        %v1683 = vshrl.u32 %v1682, 7
        %v1684 = vsub.s32 6, %v1683
        %v1685 = vrot.slane %v335, %v1684
        %v1686 = vlaneseq
        %v1687 = vshrl.u32 %v1686, 7
        %v1688 = vsub.s32 6, %v1687
        %v1689 = vrot.slane %v336, %v1688
        %v1722 = vunpack.c.l.b16 %v1650
        %v1723 = vunpack.c.h.b16 %v1650
        %v1724 = vunpack.c.l.b16 %v1651
        %v1725 = vunpack.c.h.b16 %v1651
        %v1726 = vunpack.c.l.b16 %v1652
        %v1727 = vunpack.c.h.b16 %v1652
        %v1728 = vunpack.c.l.b16 %v1653
        %v1729 = vunpack.c.h.b16 %v1653
        %v1730 = vunpack.c.l.b16 %v1654
        %v1731 = vunpack.c.h.b16 %v1654
        %v1732 = vunpack.c.l.b16 %v1655
        %v1733 = vunpack.c.h.b16 %v1655
        %v1734 = vunpack.c.l.b16 %v1656
        %v1735 = vunpack.c.h.b16 %v1656
        %v1736 = vunpack.c.l.b16 %v1657
        %v1737 = vunpack.c.h.b16 %v1657
        %v1738 = vunpack.c.l.b16 %v1658
        %v1739 = vunpack.c.h.b16 %v1658
        %v1740 = vunpack.c.l.b16 %v1659
        %v1741 = vunpack.c.h.b16 %v1659
        %v1742 = vunpack.c.l.b16 %v1660
        %v1743 = vunpack.c.h.b16 %v1660
        %v1744 = vunpack.c.l.b16 %v1661
        %v1745 = vunpack.c.h.b16 %v1661
        %v1746 = vunpack.c.l.b16 %v1662
        %v1747 = vunpack.c.h.b16 %v1662
        %v1748 = vunpack.c.l.b16 %v1663
        %v1749 = vunpack.c.h.b16 %v1663
        %v1750 = vunpack.c.l.b16 %v1664
        %v1751 = vunpack.c.h.b16 %v1664
        %v1752 = vunpack.c.l.b16 %v1665
        %v1753 = vunpack.c.h.b16 %v1665
        %v1754 = vunpack.c.l.b16 %v1666
        %v1755 = vunpack.c.h.b16 %v1666
        %v1756 = vunpack.c.l.b16 %v1667
        %v1757 = vunpack.c.h.b16 %v1667
        %v1758 = vunpack.c.l.b16 %v1668
        %v1759 = vunpack.c.h.b16 %v1668
        %v1760 = vunpack.c.l.b16 %v1669
        %v1761 = vunpack.c.h.b16 %v1669
        %v1762 = vunpack.c.l.b16 %v1670
        %v1763 = vunpack.c.h.b16 %v1670
        %v1764 = vunpack.c.l.b16 %v1671
        %v1765 = vunpack.c.h.b16 %v1671
        %v1766 = vunpack.c.l.b16 %v1672
        %v1767 = vunpack.c.h.b16 %v1672
        %v1768 = vunpack.c.l.b16 %v1673
        %v1769 = vunpack.c.h.b16 %v1673
        %v1770 = vunpack.c.l.b16 %v1674
        %v1771 = vunpack.c.h.b16 %v1674
        %v1772 = vunpack.c.l.b16 %v1675
        %v1773 = vunpack.c.h.b16 %v1675
        %v1774 = vunpack.c.l.b16 %v1676
        %v1775 = vunpack.c.h.b16 %v1676
        %v1776 = vunpack.c.l.b16 %v1677
        %v1777 = vunpack.c.h.b16 %v1677
        %v1778 = vunpack.c.l.b16 %v1678
        %v1779 = vunpack.c.h.b16 %v1678
        %v1780 = vunpack.c.l.b16 %v1679
        %v1781 = vunpack.c.h.b16 %v1679
        %v1782 = vunpack.c.l.b16 %v1680
        %v1783 = vunpack.c.h.b16 %v1680
        %v1784 = vunpack.c.l.b16 %v1681
        %v1785 = vunpack.c.h.b16 %v1681
        %v1786 = vpack.c.b16 %v1724, %v1722
        %v1787 = vpack.c.b16 %v1725, %v1723
        %v1788 = vpack.c.b16 %v1728, %v1726
        %v1789 = vpack.c.b16 %v1729, %v1727
        %v1790 = vpack.c.b16 %v1732, %v1730
        %v1791 = vpack.c.b16 %v1733, %v1731
        %v1792 = vpack.c.b16 %v1736, %v1734
        %v1793 = vpack.c.b16 %v1737, %v1735
        %v1794 = vpack.c.b16 %v1740, %v1738
        %v1795 = vpack.c.b16 %v1741, %v1739
        %v1796 = vpack.c.b16 %v1744, %v1742
        %v1797 = vpack.c.b16 %v1745, %v1743
        %v1798 = vpack.c.b16 %v1748, %v1746
        %v1799 = vpack.c.b16 %v1749, %v1747
        %v1800 = vpack.c.b16 %v1752, %v1750
        %v1801 = vpack.c.b16 %v1753, %v1751
        %v1802 = vpack.c.b16 %v1756, %v1754
        %v1803 = vpack.c.b16 %v1757, %v1755
        %v1804 = vpack.c.b16 %v1760, %v1758
        %v1805 = vpack.c.b16 %v1761, %v1759
        %v1806 = vpack.c.b16 %v1764, %v1762
        %v1807 = vpack.c.b16 %v1765, %v1763
        %v1808 = vpack.c.b16 %v1768, %v1766
        %v1809 = vpack.c.b16 %v1769, %v1767
        %v1810 = vpack.c.b16 %v1772, %v1770
        %v1811 = vpack.c.b16 %v1773, %v1771
        %v1812 = vpack.c.b16 %v1776, %v1774
        %v1813 = vpack.c.b16 %v1777, %v1775
        %v1814 = vpack.c.b16 %v1780, %v1778
        %v1815 = vpack.c.b16 %v1781, %v1779
        %v1816 = vpack.c.b16 %v1784, %v1782
        %v1817 = vpack.c.b16 %v1785, %v1783
        %1850 = vmatprep.subr.bf16.mxu0 %v1787
        %1851 = vmatpush1.bf16.msra.mxu0 %v1786
        %1852 = vmatprep.subr.bf16.mxu0 %v1789
        %1853 = vmatpush1.bf16.msra.mxu0 %v1788
        %1854 = vmatprep.subr.bf16.mxu0 %v1791
        %1855 = vmatpush1.bf16.msra.mxu0 %v1790
        %1856 = vmatprep.subr.bf16.mxu0 %v1793
        %1857 = vmatpush1.bf16.msra.mxu0 %v1792
        %1858 = vmatprep.subr.bf16.mxu0 %v1795
        %1859 = vmatpush1.bf16.msra.mxu0 %v1794
        %1860 = vmatprep.subr.bf16.mxu0 %v1797
        %1861 = vmatpush1.bf16.msra.mxu0 %v1796
        %1862 = vmatprep.subr.bf16.mxu0 %v1799
        %1863 = vmatpush1.bf16.msra.mxu0 %v1798
        %1864 = vmatprep.subr.bf16.mxu0 %v1801
        %1865 = vmatpush1.bf16.msra.mxu0 %v1800
        %1866 = vmatprep.subr.bf16.mxu0 %v1803
        %1867 = vmatpush1.bf16.msra.mxu0 %v1802
        %1868 = vmatprep.subr.bf16.mxu0 %v1805
        %1869 = vmatpush1.bf16.msra.mxu0 %v1804
        %1870 = vmatprep.subr.bf16.mxu0 %v1807
        %1871 = vmatpush1.bf16.msra.mxu0 %v1806
        %1872 = vmatprep.subr.bf16.mxu0 %v1809
        %1873 = vmatpush1.bf16.msra.mxu0 %v1808
        %1874 = vmatprep.subr.bf16.mxu0 %v1811
        %1875 = vmatpush1.bf16.msra.mxu0 %v1810
        %1876 = vmatprep.subr.bf16.mxu0 %v1813
        %1877 = vmatpush1.bf16.msra.mxu0 %v1812
        %1878 = vmatprep.subr.bf16.mxu0 %v1815
        %1879 = vmatpush1.bf16.msra.mxu0 %v1814
        %1880 = vmatprep.subr.bf16.mxu0 %v1817
        %1881 = vmatpush1.bf16.msra.mxu0 %v1816
        %1882 = vmatprep.mubr.bf16.mxu0 %v1648
        %1883 = vmatmul.mubr.bf16.gmra.mrb[0].mxu0 %v1647
        %v1884 = vpop.f32.mrb[0].mxu0
        %v1885 = vadd.f32 %v1685, %v1884
        %v1886 = vpop.f32.mrb[0].mxu0
        %v1887 = vadd.f32 %v1689, %v1886
        %v1888 = vpop.f32.mrb[0].mxu0
        %v1889 = vpop.f32.mrb[0].mxu0
        %1890 = vdwg.mxu0
        %v1891 = vmax.f32 %v1885, 0.0
        %v1892 = vmax.f32 %v1887, 0.0
        %v1893 = vlaneseq
        %v1894 = vshrl.u32 %v1893, 7
        %v1895 = vsub.s32 7, %v1894
        %v1896 = vrot.slane %v335, %v1895
        %v1897 = vlaneseq
        %v1898 = vshrl.u32 %v1897, 7
        %v1899 = vsub.s32 7, %v1898
        %v1900 = vrot.slane %v336, %v1899
        %v1901 = vmul.f32 %v1891, %v1896
        %v1902 = vmul.f32 %v1892, %v1900
        %v1903 = vadd.f32 %v1901, %v1902
        %1904 = vadd.xlane.f32.xlu0 %v1903
        %v1905 = vpop.xlane.xlu0 %1904
        %v1906 = vld [vmem:[#allocation2] sm:$0x1]
        %v1908 = vlaneseq
        %v1909 = vshrl.u32 %v1908, 7
        %v1910 = vsub.s32 0, %v1909
        %v1911 = vrot.slane %v1906, %v1910
        %v1913 = vadd.f32 %v1905, %v1911
        %vm1914 = vcmask 7168
        %1915 = vst.msk [vmem:[%s329] sm:$0xff] %vm1914, %v1913
        %v1916 = vld [vmem:[%s325] sm:$0xff]
        %v1917 = vsub.f32 %v1913, %v1916
        %v1918 = vmul.f32 %v1917, %v1917
        %1919 = vst.msk [vmem:[%s333] sm:$0xff] %vm1914, %v1918
        %p1920 = scmp.lt.s32.totalorder %s23, 1
        %s1921 = scalar_select %p1920, %s23, 1
        %s1922 = smul.addr %s1921, 8
        %s1923 = scalar_lea.vmem %s6, %s1922
        %p1924 = scmp.lt.s32.totalorder %s23, 1
        %s1925 = scalar_select %p1924, %s23, 1
        %s1926 = smul.addr %s1925, 8
        %s1927 = scalar_lea.vmem %s7, %s1926
        // Predicated region
        $region53: #{confidnet8_forward.1} parent=43 // pred_check
          %p1928 = pneg %p177
        $region54: #{confidnet8_forward.1} parent=43 // pred_check_branch
          %1930 = sbr.rel (%p1928) target = $region56
        $region55: #{confidnet8_forward.1} parent=43 // pred_region
          _
        $region56: #{confidnet8_forward.1} parent=43 // pred_fallthru
          _
        // Predicated region
        $region57: #{confidnet8_forward.1} parent=43 // pred_check
          %p1931 = pneg %p203
        $region58: #{confidnet8_forward.1} parent=43 // pred_check_branch
          %1933 = sbr.rel (%p1931) target = $region60
        $region59: #{confidnet8_forward.1} parent=43 // pred_region
          _
        $region60: #{confidnet8_forward.1} parent=43 // pred_fallthru
          _
      $region44: #{confidnet8_forward.1} parent=5 // pred_fallthru
        _
      %p1934 = scmp.le.s32.totalorder 2, %s18
      // Predicated region
      $region61: #{confidnet8_forward.1} parent=5 // pred_check
        %p1935 = pneg %p1934
      $region62: #{confidnet8_forward.1} parent=5 // pred_check_branch
        %1937 = sbr.rel (%p1935) target = $region64
      $region63: #{confidnet8_forward.1} parent=5 // pred_region
        %s1938 = ssub.s32 %s18, 2
        // Predicated region
        $region65: #{confidnet8_forward.1} parent=63 // pred_check
          %p1939 = pneg %p183
        $region66: #{confidnet8_forward.1} parent=63 // pred_check_branch
          %1941 = sbr.rel (%p1939) target = $region68
        $region67: #{confidnet8_forward.1} parent=63 // pred_region
          %p1942 = scmp.lt.s32.totalorder %s24, 1
          %s1943 = scalar_select %p1942, %s24, 1
          %s1944 = smul.addr %s1943, 8
          %s1945 = scalar_lea.vmem %s6, %s1944
        $region68: #{confidnet8_forward.1} parent=63 // pred_fallthru
          _
        // Predicated region
        $region69: #{confidnet8_forward.1} parent=63 // pred_check
          %p1946 = pneg %p209
        $region70: #{confidnet8_forward.1} parent=63 // pred_check_branch
          %1948 = sbr.rel (%p1946) target = $region72
        $region71: #{confidnet8_forward.1} parent=63 // pred_region
          %p1949 = scmp.lt.s32.totalorder %s24, 1
          %s1950 = scalar_select %p1949, %s24, 1
          %s1951 = smul.addr %s1950, 8
          %s1952 = scalar_lea.vmem %s7, %s1951
        $region72: #{confidnet8_forward.1} parent=63 // pred_fallthru
          _
      $region64: #{confidnet8_forward.1} parent=5 // pred_fallthru
        _
    $region6: #{confidnet8_forward.1} parent=1 // loop_footer
      %s22 = sadd.s32 1, %s18
    $region7: #{confidnet8_forward.1} parent=1 // loop_footer_branch
      %17 = sbr.rel target = $region3
    $region8: #{confidnet8_forward.1} parent=1 // loop_exit
      _
    %1953 = vsyncpa [#allocation4], 1
    %s1954 = scalar_lea.sflag [#allocation4], 1
    %1955 = vsyncpa %s1954, 1
    %1956 = vsyncpa [#allocation6], 1

</llo_original>
